<compile_context>
chip_gen: v6e
topology: v6e:2x2x1
jax: 0.10.0
libtpu: 0.0.40
codegen_flags: <defaults>
</compile_context>

<pallas_src>
import functools

import jax
import jax.numpy as jnp
from jax import lax
from jax.experimental import pallas as pl
from jax.experimental.pallas import tpu as pltpu

N_BINS_DEFAULT = 15
LANES = 128            # bin-stat lane width; n_bins must be <= LANES
SUBLANES = 8           # stat rows: 0=count, 1=sum(conf), 2=sum(acc), 3..7 zero
_MAX_TILE_N = 8192     # row cap per tile (keeps small-C logits tiles <= 4 MiB)
_VMEM_BUDGET_FRACTION = 0.6   # fraction of vmem_limit we plan tiles against


def _cdiv(a, b):
    return (a + b - 1) // b


def _device_config():
    """Return (tensorcores to split over, vmem_limit_bytes) for the local TPU."""
    kind = ""
    try:
        kind = jax.devices()[0].device_kind.lower()
    except Exception:
        pass
    if "v7" in kind:
        # v7x: 2 TensorCores/chip (each with its own HBM port) but only
        # 64 MiB physical VMEM per core -> cap the scoped limit at 48 MiB.
        return 2, 48 * 1024 * 1024
    # v5e / v6e (and unknown chips): 1 TensorCore, 128 MiB physical VMEM.
    # Keep an explicit limit (v5e's scoped default is only 16 MiB).
    return 1, 64 * 1024 * 1024


def _pick_tile_n(n, n_cls, itemsize, vmem_limit_bytes):
    """Rows per tile, budgeted against the lane-padded VMEM footprint."""
    padded_c = _cdiv(n_cls, LANES) * LANES
    # Conservative per-row VMEM bytes:
    #   2x double-buffered logits rows (lane-padded class width, input dtype)
    #   2x double-buffered labels rows ((tile_n, 1) int32 pads to 128 lanes)
    #   ~4 f32 tile-sized temporaries inside the body (upcast, exp, masks, ...)
    #   onehot (128 lanes) + weights (8 lanes) f32 rows
    per_row = (2 * padded_c * itemsize
               + 2 * LANES * 4
               + 4 * padded_c * 4
               + (LANES + SUBLANES) * 4)
    rows = int(vmem_limit_bytes * _VMEM_BUDGET_FRACTION) // max(1, per_row)
    align = 8 if itemsize >= 4 else 16          # bf16 packs 16 rows / vreg
    rows = max(align, min(_MAX_TILE_N, (rows // align) * align))
    rows = min(rows, max(align, _cdiv(n, align) * align))   # not bigger than data
    return rows


def _ece_kernel(logits_ref, labels_ref, stats_ref, *, n_total, n_bins,
                tiles_per_core):
    c = pl.program_id(0)   # core-split index (CORE_PARALLEL on v7x, size 1 else)
    j = pl.program_id(1)   # row-tile index within the core ("arbitrary")
    tn, n_cls = logits_ref.shape

    # Zero this core's (8, LANES) bin-stat accumulator (output block is
    # resident across the j axis).
    @pl.when(j == 0)
    def _():
        stats_ref[...] = jnp.zeros_like(stats_ref)

    x = logits_ref[...].astype(jnp.float32)     # (TN, C) — bf16 inputs upcast here
    labels = labels_ref[...]                    # (TN, 1) int32

    # confidence = max(softmax(x)) = 1 / sum(exp(x - max))
    row_max = jnp.max(x, axis=1, keepdims=True)
    denom = jnp.sum(jnp.exp(x - row_max), axis=1, keepdims=True)
    conf = 1.0 / denom                          # (TN, 1)

    # argmax prediction (first index attaining the max, like torch.max)
    col_ids = lax.broadcasted_iota(jnp.int32, x.shape, 1)
    pred = jnp.min(jnp.where(x == row_max, col_ids, n_cls), axis=1,
                   keepdims=True)
    acc = (pred == labels).astype(jnp.float32)  # (TN, 1)

    # Mask rows beyond the true N.  Use the *intended* (unclamped) global block
    # index so clamped / duplicated reads of the last partial block contribute
    # nothing, and so garbage rows of partial blocks (possibly NaN/Inf) are
    # zeroed before any accumulation.
    block_idx = c * tiles_per_core + j
    rows = block_idx * tn + lax.broadcasted_iota(jnp.int32, (tn, 1), 0)
    valid = rows < n_total                      # (TN, 1) bool
    valid_f = valid.astype(jnp.float32)
    conf_m = jnp.where(valid, conf, 0.0)        # NaN-safe select, not multiply
    acc_m = jnp.where(valid, acc, 0.0)

    # bin index: b = ceil(conf * n_bins) - 1   (in_bin <=> b/n < conf <= (b+1)/n)
    bin_idx = jnp.ceil(conf_m * float(n_bins)).astype(jnp.int32) - 1
    bin_idx = jnp.clip(bin_idx, 0, n_bins - 1)                   # (TN, 1)
    lane_ids = lax.broadcasted_iota(jnp.int32, (tn, LANES), 1)
    onehot = (lane_ids == bin_idx).astype(jnp.float32)           # (TN, LANES)

    # weights[:,0]=valid, [:,1]=conf, [:,2]=acc, rest 0 -> single MXU
    # contraction over TN:  (8, TN) @ (TN, LANES) -> (8, LANES)
    col8 = lax.broadcasted_iota(jnp.int32, (tn, SUBLANES), 1)
    weights = jnp.where(col8 == 0, valid_f,
              jnp.where(col8 == 1, conf_m,
              jnp.where(col8 == 2, acc_m, 0.0)))                 # (TN, 8)

    stats = lax.dot_general(
        weights, onehot,
        dimension_numbers=(((0,), (0,)), ((), ())),
        preferred_element_type=jnp.float32,
        precision=lax.Precision.HIGHEST)                         # (8, LANES)
    stats_ref[...] += stats


def _run_stats(logits, labels2d, *, n, n_cls, n_bins, tile_n, ncores,
               semantics, vmem_limit_bytes):
    total_tiles = _cdiv(n, tile_n)
    tpc = _cdiv(total_tiles, ncores)             # row tiles per core

    if ncores * tpc == total_tiles:
        row_block = lambda ci, ji: (ci * tpc + ji, 0)
    else:
        # Last core is over-provisioned; clamp its extra steps to the final
        # (partial) block.  The kernel masks those rows out via the unclamped
        # global row index, so nothing is double-counted.
        row_block = lambda ci, ji: (jnp.minimum(ci * tpc + ji, total_tiles - 1), 0)

    kernel = functools.partial(
        _ece_kernel, n_total=n, n_bins=n_bins, tiles_per_core=tpc)

    stats = pl.pallas_call(
        kernel,
        out_shape=jax.ShapeDtypeStruct((ncores * SUBLANES, LANES), jnp.float32),
        grid_spec=pltpu.PrefetchScalarGridSpec(
            num_scalar_prefetch=0,
            grid=(ncores, tpc),
            in_specs=[
                pl.BlockSpec((tile_n, n_cls), row_block),
                pl.BlockSpec((tile_n, 1), row_block),
            ],
            out_specs=pl.BlockSpec((SUBLANES, LANES), lambda ci, ji: (ci, 0)),
        ),
        compiler_params=pltpu.CompilerParams(
            dimension_semantics=semantics,
            vmem_limit_bytes=vmem_limit_bytes,
        ),
    )(logits, labels2d)

    # Trivial final combine of the (<= 2) per-core partial bin stats in JAX.
    return stats.reshape(ncores, SUBLANES, LANES).sum(axis=0)


def ece_loss(logits, labels, n_bins=N_BINS_DEFAULT, tile_n=None):
    """Pallas implementation of ECELoss.forward.  Returns shape (1,) float32.

    Accepts f32 or bf16 logits; bf16 halves HBM traffic (the kernel upcasts
    to f32 internally, so softmax/argmax numerics are unchanged).
    """
    assert n_bins <= LANES
    n, n_cls = logits.shape
    itemsize = jnp.dtype(logits.dtype).itemsize
    ncores_hw, vmem_limit = _device_config()

    align = 8 if itemsize >= 4 else 16
    if tile_n is None:
        tile_n = _pick_tile_n(n, n_cls, itemsize, vmem_limit)
    tile_n = max(align, (int(tile_n) // align) * align)

    total_tiles = _cdiv(n, tile_n)
    ncores = ncores_hw if total_tiles >= 2 else 1

    labels2d = labels.reshape(n, 1).astype(jnp.int32)

    run = functools.partial(_run_stats, logits, labels2d, n=n, n_cls=n_cls,
                            n_bins=n_bins, tile_n=tile_n,
                            vmem_limit_bytes=vmem_limit)
    if ncores == 2:
        try:
            # v7x: real 2-way TensorCore split of the row-tile stream.
            stats = run(ncores=2,
                        semantics=(pltpu.CORE_PARALLEL, pltpu.ARBITRARY))
        except Exception:
            # Defensive fallback (e.g. runtime exposes a single core): the
            # single-core path is always valid, just unsplit.
            stats = run(ncores=1,
                        semantics=(pltpu.ARBITRARY, pltpu.ARBITRARY))
    else:
        stats = run(ncores=1, semantics=(pltpu.ARBITRARY, pltpu.ARBITRARY))

    counts = stats[0, :n_bins]
    conf_sum = stats[1, :n_bins]
    acc_sum = stats[2, :n_bins]
    nonempty = counts > 0.0
    safe = jnp.where(nonempty, counts, 1.0)
    gap = jnp.abs(conf_sum / safe - acc_sum / safe)
    ece = jnp.sum(jnp.where(nonempty, gap * counts / float(n), 0.0))
    return ece.reshape(1)


def ece_reference(logits, labels, n_bins=N_BINS_DEFAULT):
    """Pure-JAX reference mirroring the PyTorch forward exactly."""
    sm = jax.nn.softmax(logits.astype(jnp.float32), axis=1)
    conf = jnp.max(sm, axis=1)
    pred = jnp.argmax(sm, axis=1)
    acc = (pred == labels).astype(jnp.float32)
    boundaries = jnp.linspace(0.0, 1.0, n_bins + 1)
    ece = jnp.zeros((), jnp.float32)
    for b in range(n_bins):
        lo, hi = boundaries[b], boundaries[b + 1]
        in_bin = ((conf > lo) & (conf <= hi)).astype(jnp.float32)
        cnt = jnp.sum(in_bin)
        prop = cnt / conf.shape[0]
        safe = jnp.maximum(cnt, 1.0)
        acc_in = jnp.sum(acc * in_bin) / safe
        conf_in = jnp.sum(conf * in_bin) / safe
        ece = ece + jnp.where(prop > 0, jnp.abs(conf_in - acc_in) * prop, 0.0)
    return ece.reshape(1)


if __name__ == "__main__":
    key = jax.random.PRNGKey(0)
    k1, k2, k3, k4 = jax.random.split(key, 4)

    # Case 1: small, single tile / single-core path.
    N1, C1 = 100, 16
    logits1 = jax.random.normal(k1, (N1, C1), dtype=jnp.float32) * 3.0
    labels1 = jax.random.randint(k2, (N1,), 0, C1, dtype=jnp.int32)
    out1 = ece_loss(logits1, labels1)
    jax.block_until_ready(out1)
    ref1 = ece_reference(logits1, labels1)
    assert out1.shape == (1,)
    assert jnp.allclose(out1, ref1, atol=1e-5), (out1, ref1)

    # Case 2: multi-tile, even tile count -> core split on v7x (no clamping).
    N2, C2 = 500, 64
    logits2 = jax.random.normal(k3, (N2, C2), dtype=jnp.float32) * 2.0
    labels2 = jax.random.randint(k4, (N2,), 0, C2, dtype=jnp.int32)
    ref2 = ece_reference(logits2, labels2)
    out2 = ece_loss(logits2, labels2, tile_n=64)   # cdiv(500, 64) = 8 tiles
    jax.block_until_ready(out2)
    assert jnp.allclose(out2, ref2, atol=1e-5), (out2, ref2)

    # Case 3: odd tile count -> clamped index map on the over-provisioned core.
    out3 = ece_loss(logits2, labels2, tile_n=72)   # cdiv(500, 72) = 7 tiles
    jax.block_until_ready(out3)
    assert jnp.allclose(out3, ref2, atol=1e-5), (out3, ref2)

    # Case 4: bf16 logits from HBM (half the memory traffic); kernel upcasts
    # internally, so it must match the reference computed on the same values.
    logits2_bf16 = logits2.astype(jnp.bfloat16)
    ref4 = ece_reference(logits2_bf16, labels2)
    out4 = ece_loss(logits2_bf16, labels2)
    jax.block_until_ready(out4)
    assert jnp.allclose(out4, ref4, atol=1e-5), (out4, ref4)

    print("KERNEL_OK")
</pallas_src>

<mosaic_0001>
module attributes {stable_mosaic.version = 11 : i64} {
  func.func @_ece_kernel(%arg0: i32, %arg1: i32, %arg2: memref<104x16xf32, #tpu.memory_space<vmem>>, %arg3: memref<104x1xi32, #tpu.memory_space<vmem>>, %arg4: memref<8x128xf32, #tpu.memory_space<vmem>>) attributes {dimension_semantics = [#tpu.dimension_semantics<arbitrary>, #tpu.dimension_semantics<arbitrary>], iteration_bounds = array<i64: 1, 1>, scalar_prefetch = 0 : i64, scratch_operands = 0 : i64, tpu.core_type = #tpu.core_type<tc>, window_params = [{transform_indices = @transform_0, window_bounds = array<i64: 104, 16>}, {transform_indices = @transform_1, window_bounds = array<i64: 104, 1>}, {transform_indices = @transform_2, window_bounds = array<i64: 8, 128>}]} {
    %c0_i32 = arith.constant 0 : i32
    %0 = arith.cmpi eq, %arg1, %c0_i32 : i32
    %1 = arith.extui %0 : i1 to i32
    %c0_i32_0 = arith.constant 0 : i32
    %2 = arith.cmpi ne, %1, %c0_i32_0 : i32
    scf.if %2 {
      %cst_20 = arith.constant 0.000000e+00 : f32
      %74 = vector.broadcast %cst_20 : f32 to vector<8x128xf32>
      %c0_21 = arith.constant 0 : index
      %c0_22 = arith.constant 0 : index
      %75 = vector.load %arg4[%c0_21, %c0_22] : memref<8x128xf32, #tpu.memory_space<vmem>>, vector<8x128xf32>
      tpu.vector_store %arg4[%c0_21, %c0_22], %74 {strides = array<i32>} : memref<8x128xf32, #tpu.memory_space<vmem>>, vector<8x128xf32>,
    } else {
    }
    %c0 = arith.constant 0 : index
    %c0_1 = arith.constant 0 : index
    %3 = vector.load %arg2[%c0, %c0_1] : memref<104x16xf32, #tpu.memory_space<vmem>>, vector<104x16xf32>
    %c0_2 = arith.constant 0 : index
    %c0_3 = arith.constant 0 : index
    %4 = vector.load %arg3[%c0_2, %c0_3] : memref<104x1xi32, #tpu.memory_space<vmem>>, vector<104x1xi32>
    %cst = arith.constant dense<0xFF800000> : vector<104xf32>
    %5 = vector.multi_reduction <maximumf>, %3, %cst [1] : vector<104x16xf32> to vector<104xf32>
    %6 = vector.shape_cast %5 : vector<104xf32> to vector<104x1xf32>
    %7 = vector.broadcast %6 : vector<104x1xf32> to vector<104x16xf32>
    %8 = arith.subf %3, %7 : vector<104x16xf32>
    %9 = math.exp %8 : vector<104x16xf32>
    %cst_4 = arith.constant dense<0.000000e+00> : vector<104xf32>
    %10 = vector.multi_reduction <add>, %9, %cst_4 [1] : vector<104x16xf32> to vector<104xf32>
    %11 = vector.shape_cast %10 : vector<104xf32> to vector<104x1xf32>
    %cst_5 = arith.constant 1.000000e+00 : f32
    %12 = vector.broadcast %cst_5 : f32 to vector<104x1xf32>
    %13 = arith.divf %12, %11 : vector<104x1xf32>
    %14 = tpu.iota {dimensions = array<i32: 1>} : vector<104x16xi32>
    %15 = vector.broadcast %6 : vector<104x1xf32> to vector<104x16xf32>
    %16 = arith.cmpf oeq, %3, %15 : vector<104x16xf32>
    %c16_i32 = arith.constant 16 : i32
    %17 = vector.broadcast %c16_i32 : i32 to vector<104x16xi32>
    %18 = arith.select %16, %14, %17 : vector<104x16xi1>, vector<104x16xi32>
    %cst_6 = arith.constant dense<2147483647> : vector<104xi32>
    %19 = vector.multi_reduction <minsi>, %18, %cst_6 [1] : vector<104x16xi32> to vector<104xi32>
    %20 = vector.shape_cast %19 : vector<104xi32> to vector<104x1xi32>
    %21 = arith.cmpi eq, %20, %4 : vector<104x1xi32>
    %22 = arith.extui %21 : vector<104x1xi1> to vector<104x1xi32>
    %23 = arith.sitofp %22 : vector<104x1xi32> to vector<104x1xf32>
    %c1_i32 = arith.constant 1 : i32
    %24 = arith.muli %arg0, %c1_i32 : i32
    %25 = arith.addi %24, %arg1 : i32
    %c104_i32 = arith.constant 104 : i32
    %26 = arith.muli %25, %c104_i32 : i32
    %27 = tpu.iota {dimensions = array<i32: 0>} : vector<104x1xi32>
    %28 = vector.broadcast %26 : i32 to vector<104x1xi32>
    %29 = arith.addi %28, %27 : vector<104x1xi32>
    %c100_i32 = arith.constant 100 : i32
    %30 = vector.broadcast %c100_i32 : i32 to vector<104x1xi32>
    %31 = arith.cmpi slt, %29, %30 : vector<104x1xi32>
    %32 = arith.extui %31 : vector<104x1xi1> to vector<104x1xi32>
    %33 = arith.sitofp %32 : vector<104x1xi32> to vector<104x1xf32>
    %cst_7 = arith.constant 0.000000e+00 : f32
    %34 = vector.broadcast %cst_7 : f32 to vector<104x1xf32>
    %35 = arith.select %31, %13, %34 : vector<104x1xi1>, vector<104x1xf32>
    %cst_8 = arith.constant 0.000000e+00 : f32
    %36 = vector.broadcast %cst_8 : f32 to vector<104x1xf32>
    %37 = arith.select %31, %23, %36 : vector<104x1xi1>, vector<104x1xf32>
    %cst_9 = arith.constant 1.500000e+01 : f32
    %38 = vector.broadcast %cst_9 : f32 to vector<104x1xf32>
    %39 = arith.mulf %35, %38 : vector<104x1xf32>
    %40 = math.ceil %39 : vector<104x1xf32>
    %41 = arith.fptosi %40 : vector<104x1xf32> to vector<104x1xi32>
    %c1_i32_10 = arith.constant 1 : i32
    %42 = vector.broadcast %c1_i32_10 : i32 to vector<104x1xi32>
    %43 = arith.subi %41, %42 : vector<104x1xi32>
    %c0_i32_11 = arith.constant 0 : i32
    %c14_i32 = arith.constant 14 : i32
    %44 = vector.broadcast %c0_i32_11 : i32 to vector<104x1xi32>
    %45 = arith.maxsi %44, %43 : vector<104x1xi32>
    %46 = vector.broadcast %c14_i32 : i32 to vector<104x1xi32>
    %47 = arith.minsi %46, %45 : vector<104x1xi32>
    %48 = tpu.iota {dimensions = array<i32: 1>} : vector<104x128xi32>
    %49 = vector.broadcast %47 : vector<104x1xi32> to vector<104x128xi32>
    %50 = arith.cmpi eq, %48, %49 : vector<104x128xi32>
    %51 = arith.extui %50 : vector<104x128xi1> to vector<104x128xi32>
    %52 = arith.sitofp %51 : vector<104x128xi32> to vector<104x128xf32>
    %53 = tpu.iota {dimensions = array<i32: 1>} : vector<104x8xi32>
    %c0_i32_12 = arith.constant 0 : i32
    %54 = vector.broadcast %c0_i32_12 : i32 to vector<104x8xi32>
    %55 = arith.cmpi eq, %53, %54 : vector<104x8xi32>
    %c1_i32_13 = arith.constant 1 : i32
    %56 = vector.broadcast %c1_i32_13 : i32 to vector<104x8xi32>
    %57 = arith.cmpi eq, %53, %56 : vector<104x8xi32>
    %c2_i32 = arith.constant 2 : i32
    %58 = vector.broadcast %c2_i32 : i32 to vector<104x8xi32>
    %59 = arith.cmpi eq, %53, %58 : vector<104x8xi32>
    %cst_14 = arith.constant 0.000000e+00 : f32
    %60 = vector.shape_cast %37 : vector<104x1xf32> to vector<104x1xf32>
    %61 = vector.broadcast %60 : vector<104x1xf32> to vector<104x8xf32>
    %62 = vector.broadcast %cst_14 : f32 to vector<104x8xf32>
    %63 = arith.select %59, %61, %62 : vector<104x8xi1>, vector<104x8xf32>
    %64 = vector.shape_cast %35 : vector<104x1xf32> to vector<104x1xf32>
    %65 = vector.broadcast %64 : vector<104x1xf32> to vector<104x8xf32>
    %66 = arith.select %57, %65, %63 : vector<104x8xi1>, vector<104x8xf32>
    %67 = vector.shape_cast %33 : vector<104x1xf32> to vector<104x1xf32>
    %68 = vector.broadcast %67 : vector<104x1xf32> to vector<104x8xf32>
    %69 = arith.select %55, %68, %66 : vector<104x8xi1>, vector<104x8xf32>
    %cst_15 = arith.constant dense<0.000000e+00> : vector<8x128xf32>
    %70 = tpu.matmul %69, %52, %cst_15 {dimension_numbers = #tpu.dot_dimension_numbers<[0], [0], [1], [1], [0, 1, 1, 1], [], []>, precision = #tpu.contract_precision<fp32>} : vector<104x8xf32>, vector<104x128xf32>, vector<8x128xf32> -> vector<8x128xf32>
    %c0_16 = arith.constant 0 : index
    %c0_17 = arith.constant 0 : index
    %71 = vector.load %arg4[%c0_16, %c0_17] : memref<8x128xf32, #tpu.memory_space<vmem>>, vector<8x128xf32>
    %72 = arith.addf %71, %70 : vector<8x128xf32>
    %c0_18 = arith.constant 0 : index
    %c0_19 = arith.constant 0 : index
    %73 = vector.load %arg4[%c0_18, %c0_19] : memref<8x128xf32, #tpu.memory_space<vmem>>, vector<8x128xf32>
    tpu.vector_store %arg4[%c0_18, %c0_19], %72 {strides = array<i32>} : memref<8x128xf32, #tpu.memory_space<vmem>>, vector<8x128xf32>,
    return
  }
  func.func @transform_0(%arg0: i32, %arg1: i32) -> (i32, i32) {
    %c1_i32 = arith.constant 1 : i32
    %0 = arith.muli %arg0, %c1_i32 : i32
    %1 = arith.addi %0, %arg1 : i32
    %c0_i32 = arith.constant 0 : i32
    %c0_i32_0 = arith.constant 0 : i32
    return %1, %c0_i32 : i32, i32
  }
  func.func @transform_1(%arg0: i32, %arg1: i32) -> (i32, i32) {
    %c1_i32 = arith.constant 1 : i32
    %0 = arith.muli %arg0, %c1_i32 : i32
    %1 = arith.addi %0, %arg1 : i32
    %c0_i32 = arith.constant 0 : i32
    %c0_i32_0 = arith.constant 0 : i32
    return %1, %c0_i32 : i32, i32
  }
  func.func @transform_2(%arg0: i32, %arg1: i32) -> (i32, i32) {
    %c0_i32 = arith.constant 0 : i32
    %c0_i32_0 = arith.constant 0 : i32
    return %arg0, %c0_i32 : i32, i32
  }
}

</mosaic_0001>

<llo_original>
// kernel: tpu_custom_call.1
$region0: #{tpu_custom_call.1}
  #allocation0 [shape = 'u32[]', space=smem, size = 0x4, offset = 0x4, fixed_abs, tag = 'smem constant byte address 0x4 - core index']
  #allocation1 [shape = 'u32[144,128]{1,0:T(1,128)}', space=vmem, size = 0x12000, scoped, tag = 'internal scratch']
  %s0 = inlined_call_operand.vmem [shape: f32[100,16], index: 0, kind: input, shape index: {}]
  %s1 = inlined_call_operand.vmem [shape: s32[100,1], index: 1, kind: input, shape index: {}]
  %s2 = inlined_call_operand.hbm [shape: f32[8,128], index: 2, kind: output, shape index: {}]
  %s3 = sld [smem:[#allocation0]]
  $region22: #{tpu_custom_call.1} parent=0
    _
  %s5 = ssub.s32 1, %s3
  %s6 = scalar_select 0, %s5, %s3
  $region1: #{tpu_custom_call.1} parent=0
    #allocation2 [shape = 'u8[4096]{0}', space=vmem, size = 0x1000, scoped, tag = 'output window, operand 0, single buffered']
    #allocation3 [shape = 's32[1]{0}', space=sflag, size = 0x4, scoped, tag = 'scoped memory for tpu_custom_call.1']
    %7 = vsyncpa [#allocation3], 0
    // Predicated region
    $region2: #{tpu_custom_call.1} parent=1 // pred_check
      _
    $region3: #{tpu_custom_call.1} parent=1 // pred_check_branch
      %9 = sbr.rel (0) target = $region5
    $region4: #{tpu_custom_call.1} parent=1 // pred_region
      %s10 = sadd.s32 0, 0
      %s11 = smul.u32 13, %s10
      %p12 = scmp.lt.s32.totalorder %s11, 12
      %s13 = scalar_select %p12, %s11, 12
      %s14 = smul.addr %s13, 8
      %s15 = scalar_lea.vmem %s0, %s14
      %s16 = sadd.s32 0, 0
      %s17 = smul.u32 13, %s16
    $region5: #{tpu_custom_call.1} parent=1 // pred_fallthru
      _
    // Predicated region
    $region6: #{tpu_custom_call.1} parent=1 // pred_check
      _
    $region7: #{tpu_custom_call.1} parent=1 // pred_check_branch
      %19 = sbr.rel (0) target = $region9
    $region8: #{tpu_custom_call.1} parent=1 // pred_region
      %s20 = sadd.s32 0, 0
      %s21 = smul.u32 13, %s20
      %p22 = scmp.lt.s32.totalorder %s21, 12
      %s23 = scalar_select %p22, %s21, 12
      %s24 = smul.addr %s23, 8
      %s25 = scalar_lea.vmem %s1, %s24
      %s26 = sadd.s32 0, 0
      %s27 = smul.u32 13, %s26
    $region9: #{tpu_custom_call.1} parent=1 // pred_fallthru
      _
    %s28 = sadd.s32 0, 0
    %s29 = smul.u32 13, %s28
    %p30 = scmp.lt.s32.totalorder %s29, 12
    %s31 = scalar_select %p30, %s29, 12
    %s32 = smul.addr %s31, 8
    %s33 = scalar_lea.vmem %s0, %s32
    %s34 = sadd.s32 0, 0
    %s35 = smul.u32 13, %s34
    %p36 = scmp.lt.s32.totalorder %s35, 12
    %s37 = scalar_select %p36, %s35, 12
    %s38 = smul.addr %s37, 8
    %s39 = scalar_lea.vmem %s1, %s38
    %s40 = sadd.s32 0, 0
    %s41 = smul.u32 13, %s40
    %p42 = scmp.lt.s32.totalorder %s41, 12
    %s43 = scalar_select %p42, %s41, 12
    %s44 = smul.addr %s43, 8
    %s45 = scalar_lea.vmem %s0, %s44
    %s46 = sadd.s32 0, 0
    %s47 = smul.u32 13, %s46
    %s48 = sadd.s32 0, 0
    %s49 = smul.u32 13, %s48
    %p50 = scmp.lt.s32.totalorder %s49, 12
    %s51 = scalar_select %p50, %s49, 12
    %s52 = smul.addr %s51, 8
    %s53 = scalar_lea.vmem %s1, %s52
    %s54 = sadd.s32 0, 0
    %s55 = smul.u32 13, %s54
    %p56 = scmp.eq.s32.totalorder 0, 0
    // Predicated region
    $region10: #{tpu_custom_call.1} parent=1 // pred_check
      %p57 = pneg %p56
    $region11: #{tpu_custom_call.1} parent=1 // pred_check_branch
      %59 = sbr.rel (%p57) target = $region13
    $region12: #{tpu_custom_call.1} parent=1 // pred_region
      %60 = vst [vmem:[#allocation2] sm:$0xff] 0.0
    $region13: #{tpu_custom_call.1} parent=1 // pred_fallthru
      _
    %v61 = vld [vmem:[%s45] sm:$0xff]
    %v62 = vld [vmem:[%s45 + $0x8] sm:$0xff]
    %v63 = vld [vmem:[%s45 + $0x10] sm:$0xff]
    %v64 = vld [vmem:[%s45 + $0x18] sm:$0xff]
    %v65 = vld [vmem:[%s45 + $0x20] sm:$0xff]
    %v66 = vld [vmem:[%s45 + $0x28] sm:$0xff]
    %v67 = vld [vmem:[%s45 + $0x30] sm:$0xff]
    %v68 = vld [vmem:[%s45 + $0x38] sm:$0xff]
    %v69 = vld [vmem:[%s45 + $0x40] sm:$0xff]
    %v70 = vld [vmem:[%s45 + $0x48] sm:$0xff]
    %v71 = vld [vmem:[%s45 + $0x50] sm:$0xff]
    %v72 = vld [vmem:[%s45 + $0x58] sm:$0xff]
    %v73 = vld [vmem:[%s45 + $0x60] sm:$0xff]
    %v74 = vld [vmem:[%s53] sm:$0xff]
    %v75 = vld [vmem:[%s53 + $0x8] sm:$0xff]
    %v76 = vld [vmem:[%s53 + $0x10] sm:$0xff]
    %v77 = vld [vmem:[%s53 + $0x18] sm:$0xff]
    %v78 = vld [vmem:[%s53 + $0x20] sm:$0xff]
    %v79 = vld [vmem:[%s53 + $0x28] sm:$0xff]
    %v80 = vld [vmem:[%s53 + $0x30] sm:$0xff]
    %v81 = vld [vmem:[%s53 + $0x38] sm:$0xff]
    %v82 = vld [vmem:[%s53 + $0x40] sm:$0xff]
    %v83 = vld [vmem:[%s53 + $0x48] sm:$0xff]
    %v84 = vld [vmem:[%s53 + $0x50] sm:$0xff]
    %v85 = vld [vmem:[%s53 + $0x58] sm:$0xff]
    %v86 = vld [vmem:[%s53 + $0x60] sm:$0xff]
    %vm87 = vcmask 130048
    %v88 = vsel %vm87, %v61, -inf
    %89 = vmax.xlane.f32.xlu0 %v88
    %v90 = vpop.xlane.xlu0 %89
    %v91 = vsel %vm87, %v62, -inf
    %92 = vmax.xlane.f32.xlu0 %v91
    %v93 = vpop.xlane.xlu0 %92
    %v94 = vsel %vm87, %v63, -inf
    %95 = vmax.xlane.f32.xlu0 %v94
    %v96 = vpop.xlane.xlu0 %95
    %v97 = vsel %vm87, %v64, -inf
    %98 = vmax.xlane.f32.xlu0 %v97
    %v99 = vpop.xlane.xlu0 %98
    %v100 = vsel %vm87, %v65, -inf
    %101 = vmax.xlane.f32.xlu0 %v100
    %v102 = vpop.xlane.xlu0 %101
    %v103 = vsel %vm87, %v66, -inf
    %104 = vmax.xlane.f32.xlu0 %v103
    %v105 = vpop.xlane.xlu0 %104
    %v106 = vsel %vm87, %v67, -inf
    %107 = vmax.xlane.f32.xlu0 %v106
    %v108 = vpop.xlane.xlu0 %107
    %v109 = vsel %vm87, %v68, -inf
    %110 = vmax.xlane.f32.xlu0 %v109
    %v111 = vpop.xlane.xlu0 %110
    %v112 = vsel %vm87, %v69, -inf
    %113 = vmax.xlane.f32.xlu0 %v112
    %v114 = vpop.xlane.xlu0 %113
    %v115 = vsel %vm87, %v70, -inf
    %116 = vmax.xlane.f32.xlu0 %v115
    %v117 = vpop.xlane.xlu0 %116
    %v118 = vsel %vm87, %v71, -inf
    %119 = vmax.xlane.f32.xlu0 %v118
    %v120 = vpop.xlane.xlu0 %119
    %v121 = vsel %vm87, %v72, -inf
    %122 = vmax.xlane.f32.xlu0 %v121
    %v123 = vpop.xlane.xlu0 %122
    %v124 = vsel %vm87, %v73, -inf
    %125 = vmax.xlane.f32.xlu0 %v124
    %v126 = vpop.xlane.xlu0 %125
    %v127 = vsub.f32 %v61, %v90
    %v128 = vsub.f32 %v62, %v93
    %v129 = vsub.f32 %v63, %v96
    %v130 = vsub.f32 %v64, %v99
    %v131 = vsub.f32 %v65, %v102
    %v132 = vsub.f32 %v66, %v105
    %v133 = vsub.f32 %v67, %v108
    %v134 = vsub.f32 %v68, %v111
    %v135 = vsub.f32 %v69, %v114
    %v136 = vsub.f32 %v70, %v117
    %v137 = vsub.f32 %v71, %v120
    %v138 = vsub.f32 %v72, %v123
    %v139 = vsub.f32 %v73, %v126
    %v140 = vmul.f32 %v127, 1.442695
    %v141 = vpow.pop %v140
    %v142 = vmul.f32 %v128, 1.442695
    %v143 = vpow.pop %v142
    %v144 = vmul.f32 %v129, 1.442695
    %v145 = vpow.pop %v144
    %v146 = vmul.f32 %v130, 1.442695
    %v147 = vpow.pop %v146
    %v148 = vmul.f32 %v131, 1.442695
    %v149 = vpow.pop %v148
    %v150 = vmul.f32 %v132, 1.442695
    %v151 = vpow.pop %v150
    %v152 = vmul.f32 %v133, 1.442695
    %v153 = vpow.pop %v152
    %v154 = vmul.f32 %v134, 1.442695
    %v155 = vpow.pop %v154
    %v156 = vmul.f32 %v135, 1.442695
    %v157 = vpow.pop %v156
    %v158 = vmul.f32 %v136, 1.442695
    %v159 = vpow.pop %v158
    %v160 = vmul.f32 %v137, 1.442695
    %v161 = vpow.pop %v160
    %v162 = vmul.f32 %v138, 1.442695
    %v163 = vpow.pop %v162
    %v164 = vmul.f32 %v139, 1.442695
    %v165 = vpow.pop %v164
    %v166 = vsel %vm87, %v141, 0.0
    %167 = vadd.xlane.f32.xlu0 %v166
    %v168 = vpop.xlane.xlu0 %167
    %v169 = vsel %vm87, %v143, 0.0
    %170 = vadd.xlane.f32.xlu0 %v169
    %v171 = vpop.xlane.xlu0 %170
    %v172 = vsel %vm87, %v145, 0.0
    %173 = vadd.xlane.f32.xlu0 %v172
    %v174 = vpop.xlane.xlu0 %173
    %v175 = vsel %vm87, %v147, 0.0
    %176 = vadd.xlane.f32.xlu0 %v175
    %v177 = vpop.xlane.xlu0 %176
    %v178 = vsel %vm87, %v149, 0.0
    %179 = vadd.xlane.f32.xlu0 %v178
    %v180 = vpop.xlane.xlu0 %179
    %v181 = vsel %vm87, %v151, 0.0
    %182 = vadd.xlane.f32.xlu0 %v181
    %v183 = vpop.xlane.xlu0 %182
    %v184 = vsel %vm87, %v153, 0.0
    %185 = vadd.xlane.f32.xlu0 %v184
    %v186 = vpop.xlane.xlu0 %185
    %v187 = vsel %vm87, %v155, 0.0
    %188 = vadd.xlane.f32.xlu0 %v187
    %v189 = vpop.xlane.xlu0 %188
    %v190 = vsel %vm87, %v157, 0.0
    %191 = vadd.xlane.f32.xlu0 %v190
    %v192 = vpop.xlane.xlu0 %191
    %v193 = vsel %vm87, %v159, 0.0
    %194 = vadd.xlane.f32.xlu0 %v193
    %v195 = vpop.xlane.xlu0 %194
    %v196 = vsel %vm87, %v161, 0.0
    %197 = vadd.xlane.f32.xlu0 %v196
    %v198 = vpop.xlane.xlu0 %197
    %v199 = vsel %vm87, %v163, 0.0
    %200 = vadd.xlane.f32.xlu0 %v199
    %v201 = vpop.xlane.xlu0 %200
    %v202 = vsel %vm87, %v165, 0.0
    %203 = vadd.xlane.f32.xlu0 %v202
    %v204 = vpop.xlane.xlu0 %203
    %v205 = vrcp.pop %v168
    %v206 = vmul.f32 1.0, %v205
    %v207 = vrcp.pop %v171
    %v208 = vmul.f32 1.0, %v207
    %v209 = vrcp.pop %v174
    %v210 = vmul.f32 1.0, %v209
    %v211 = vrcp.pop %v177
    %v212 = vmul.f32 1.0, %v211
    %v213 = vrcp.pop %v180
    %v214 = vmul.f32 1.0, %v213
    %v215 = vrcp.pop %v183
    %v216 = vmul.f32 1.0, %v215
    %v217 = vrcp.pop %v186
    %v218 = vmul.f32 1.0, %v217
    %v219 = vrcp.pop %v189
    %v220 = vmul.f32 1.0, %v219
    %v221 = vrcp.pop %v192
    %v222 = vmul.f32 1.0, %v221
    %v223 = vrcp.pop %v195
    %v224 = vmul.f32 1.0, %v223
    %v225 = vrcp.pop %v198
    %v226 = vmul.f32 1.0, %v225
    %v227 = vrcp.pop %v201
    %v228 = vmul.f32 1.0, %v227
    %v229 = vrcp.pop %v204
    %v230 = vmul.f32 1.0, %v229
    %v231 = vlaneseq
    %v232 = vand.u32 %v231, 127
    %vm233 = vcmp.eq.f32.partialorder %v61, %v90
    %vm234 = vcmp.eq.f32.partialorder %v62, %v93
    %vm235 = vcmp.eq.f32.partialorder %v63, %v96
    %vm236 = vcmp.eq.f32.partialorder %v64, %v99
    %vm237 = vcmp.eq.f32.partialorder %v65, %v102
    %vm238 = vcmp.eq.f32.partialorder %v66, %v105
    %vm239 = vcmp.eq.f32.partialorder %v67, %v108
    %vm240 = vcmp.eq.f32.partialorder %v68, %v111
    %vm241 = vcmp.eq.f32.partialorder %v69, %v114
    %vm242 = vcmp.eq.f32.partialorder %v70, %v117
    %vm243 = vcmp.eq.f32.partialorder %v71, %v120
    %vm244 = vcmp.eq.f32.partialorder %v72, %v123
    %vm245 = vcmp.eq.f32.partialorder %v73, %v126
    %v246 = vsel %vm233, %v232, 16
    %v247 = vsel %vm234, %v232, 16
    %v248 = vsel %vm235, %v232, 16
    %v249 = vsel %vm236, %v232, 16
    %v250 = vsel %vm237, %v232, 16
    %v251 = vsel %vm238, %v232, 16
    %v252 = vsel %vm239, %v232, 16
    %v253 = vsel %vm240, %v232, 16
    %v254 = vsel %vm241, %v232, 16
    %v255 = vsel %vm242, %v232, 16
    %v256 = vsel %vm243, %v232, 16
    %v257 = vsel %vm244, %v232, 16
    %v258 = vsel %vm245, %v232, 16
    %v259 = vsel %vm87, %v246, 2147483647
    %v260 = vand.u32 %v259, 65535
    %v261 = vshra.s32 %v259, 16
    %v262 = vcvt.s32.f32 %v260
    %v263 = vcvt.s32.f32 %v261
    %264 = vmin.xlane.f32.xlu0 %v263
    %v265 = vpop.xlane.xlu0 %264
    %vm266 = vcmp.eq.f32.partialorder %v263, %v265
    %v267 = vsel %vm266, %v262, inf
    %268 = vmin.xlane.f32.xlu0 %v267
    %v269 = vpop.xlane.xlu0 %268
    %v270 = vcvt.f32.s32 %v269
    %v271 = vcvt.f32.s32 %v265
    %v272 = vshll.u32 %v271, 16
    %v273 = vadd.s32 %v272, %v270
    %v274 = vsel %vm87, %v247, 2147483647
    %v275 = vand.u32 %v274, 65535
    %v276 = vshra.s32 %v274, 16
    %v277 = vcvt.s32.f32 %v275
    %v278 = vcvt.s32.f32 %v276
    %279 = vmin.xlane.f32.xlu0 %v278
    %v280 = vpop.xlane.xlu0 %279
    %vm281 = vcmp.eq.f32.partialorder %v278, %v280
    %v282 = vsel %vm281, %v277, inf
    %283 = vmin.xlane.f32.xlu0 %v282
    %v284 = vpop.xlane.xlu0 %283
    %v285 = vcvt.f32.s32 %v284
    %v286 = vcvt.f32.s32 %v280
    %v287 = vshll.u32 %v286, 16
    %v288 = vadd.s32 %v287, %v285
    %v289 = vsel %vm87, %v248, 2147483647
    %v290 = vand.u32 %v289, 65535
    %v291 = vshra.s32 %v289, 16
    %v292 = vcvt.s32.f32 %v290
    %v293 = vcvt.s32.f32 %v291
    %294 = vmin.xlane.f32.xlu0 %v293
    %v295 = vpop.xlane.xlu0 %294
    %vm296 = vcmp.eq.f32.partialorder %v293, %v295
    %v297 = vsel %vm296, %v292, inf
    %298 = vmin.xlane.f32.xlu0 %v297
    %v299 = vpop.xlane.xlu0 %298
    %v300 = vcvt.f32.s32 %v299
    %v301 = vcvt.f32.s32 %v295
    %v302 = vshll.u32 %v301, 16
    %v303 = vadd.s32 %v302, %v300
    %v304 = vsel %vm87, %v249, 2147483647
    %v305 = vand.u32 %v304, 65535
    %v306 = vshra.s32 %v304, 16
    %v307 = vcvt.s32.f32 %v305
    %v308 = vcvt.s32.f32 %v306
    %309 = vmin.xlane.f32.xlu0 %v308
    %v310 = vpop.xlane.xlu0 %309
    %vm311 = vcmp.eq.f32.partialorder %v308, %v310
    %v312 = vsel %vm311, %v307, inf
    %313 = vmin.xlane.f32.xlu0 %v312
    %v314 = vpop.xlane.xlu0 %313
    %v315 = vcvt.f32.s32 %v314
    %v316 = vcvt.f32.s32 %v310
    %v317 = vshll.u32 %v316, 16
    %v318 = vadd.s32 %v317, %v315
    %v319 = vsel %vm87, %v250, 2147483647
    %v320 = vand.u32 %v319, 65535
    %v321 = vshra.s32 %v319, 16
    %v322 = vcvt.s32.f32 %v320
    %v323 = vcvt.s32.f32 %v321
    %324 = vmin.xlane.f32.xlu0 %v323
    %v325 = vpop.xlane.xlu0 %324
    %vm326 = vcmp.eq.f32.partialorder %v323, %v325
    %v327 = vsel %vm326, %v322, inf
    %328 = vmin.xlane.f32.xlu0 %v327
    %v329 = vpop.xlane.xlu0 %328
    %v330 = vcvt.f32.s32 %v329
    %v331 = vcvt.f32.s32 %v325
    %v332 = vshll.u32 %v331, 16
    %v333 = vadd.s32 %v332, %v330
    %v334 = vsel %vm87, %v251, 2147483647
    %v335 = vand.u32 %v334, 65535
    %v336 = vshra.s32 %v334, 16
    %v337 = vcvt.s32.f32 %v335
    %v338 = vcvt.s32.f32 %v336
    %339 = vmin.xlane.f32.xlu0 %v338
    %v340 = vpop.xlane.xlu0 %339
    %vm341 = vcmp.eq.f32.partialorder %v338, %v340
    %v342 = vsel %vm341, %v337, inf
    %343 = vmin.xlane.f32.xlu0 %v342
    %v344 = vpop.xlane.xlu0 %343
    %v345 = vcvt.f32.s32 %v344
    %v346 = vcvt.f32.s32 %v340
    %v347 = vshll.u32 %v346, 16
    %v348 = vadd.s32 %v347, %v345
    %v349 = vsel %vm87, %v252, 2147483647
    %v350 = vand.u32 %v349, 65535
    %v351 = vshra.s32 %v349, 16
    %v352 = vcvt.s32.f32 %v350
    %v353 = vcvt.s32.f32 %v351
    %354 = vmin.xlane.f32.xlu0 %v353
    %v355 = vpop.xlane.xlu0 %354
    %vm356 = vcmp.eq.f32.partialorder %v353, %v355
    %v357 = vsel %vm356, %v352, inf
    %358 = vmin.xlane.f32.xlu0 %v357
    %v359 = vpop.xlane.xlu0 %358
    %v360 = vcvt.f32.s32 %v359
    %v361 = vcvt.f32.s32 %v355
    %v362 = vshll.u32 %v361, 16
    %v363 = vadd.s32 %v362, %v360
    %v364 = vsel %vm87, %v253, 2147483647
    %v365 = vand.u32 %v364, 65535
    %v366 = vshra.s32 %v364, 16
    %v367 = vcvt.s32.f32 %v365
    %v368 = vcvt.s32.f32 %v366
    %369 = vmin.xlane.f32.xlu0 %v368
    %v370 = vpop.xlane.xlu0 %369
    %vm371 = vcmp.eq.f32.partialorder %v368, %v370
    %v372 = vsel %vm371, %v367, inf
    %373 = vmin.xlane.f32.xlu0 %v372
    %v374 = vpop.xlane.xlu0 %373
    %v375 = vcvt.f32.s32 %v374
    %v376 = vcvt.f32.s32 %v370
    %v377 = vshll.u32 %v376, 16
    %v378 = vadd.s32 %v377, %v375
    %v379 = vsel %vm87, %v254, 2147483647
    %v380 = vand.u32 %v379, 65535
    %v381 = vshra.s32 %v379, 16
    %v382 = vcvt.s32.f32 %v380
    %v383 = vcvt.s32.f32 %v381
    %384 = vmin.xlane.f32.xlu0 %v383
    %v385 = vpop.xlane.xlu0 %384
    %vm386 = vcmp.eq.f32.partialorder %v383, %v385
    %v387 = vsel %vm386, %v382, inf
    %388 = vmin.xlane.f32.xlu0 %v387
    %v389 = vpop.xlane.xlu0 %388
    %v390 = vcvt.f32.s32 %v389
    %v391 = vcvt.f32.s32 %v385
    %v392 = vshll.u32 %v391, 16
    %v393 = vadd.s32 %v392, %v390
    %v394 = vsel %vm87, %v255, 2147483647
    %v395 = vand.u32 %v394, 65535
    %v396 = vshra.s32 %v394, 16
    %v397 = vcvt.s32.f32 %v395
    %v398 = vcvt.s32.f32 %v396
    %399 = vmin.xlane.f32.xlu0 %v398
    %v400 = vpop.xlane.xlu0 %399
    %vm401 = vcmp.eq.f32.partialorder %v398, %v400
    %v402 = vsel %vm401, %v397, inf
    %403 = vmin.xlane.f32.xlu0 %v402
    %v404 = vpop.xlane.xlu0 %403
    %v405 = vcvt.f32.s32 %v404
    %v406 = vcvt.f32.s32 %v400
    %v407 = vshll.u32 %v406, 16
    %v408 = vadd.s32 %v407, %v405
    %v409 = vsel %vm87, %v256, 2147483647
    %v410 = vand.u32 %v409, 65535
    %v411 = vshra.s32 %v409, 16
    %v412 = vcvt.s32.f32 %v410
    %v413 = vcvt.s32.f32 %v411
    %414 = vmin.xlane.f32.xlu0 %v413
    %v415 = vpop.xlane.xlu0 %414
    %vm416 = vcmp.eq.f32.partialorder %v413, %v415
    %v417 = vsel %vm416, %v412, inf
    %418 = vmin.xlane.f32.xlu0 %v417
    %v419 = vpop.xlane.xlu0 %418
    %v420 = vcvt.f32.s32 %v419
    %v421 = vcvt.f32.s32 %v415
    %v422 = vshll.u32 %v421, 16
    %v423 = vadd.s32 %v422, %v420
    %v424 = vsel %vm87, %v257, 2147483647
    %v425 = vand.u32 %v424, 65535
    %v426 = vshra.s32 %v424, 16
    %v427 = vcvt.s32.f32 %v425
    %v428 = vcvt.s32.f32 %v426
    %429 = vmin.xlane.f32.xlu0 %v428
    %v430 = vpop.xlane.xlu0 %429
    %vm431 = vcmp.eq.f32.partialorder %v428, %v430
    %v432 = vsel %vm431, %v427, inf
    %433 = vmin.xlane.f32.xlu0 %v432
    %v434 = vpop.xlane.xlu0 %433
    %v435 = vcvt.f32.s32 %v434
    %v436 = vcvt.f32.s32 %v430
    %v437 = vshll.u32 %v436, 16
    %v438 = vadd.s32 %v437, %v435
    %v439 = vsel %vm87, %v258, 2147483647
    %v440 = vand.u32 %v439, 65535
    %v441 = vshra.s32 %v439, 16
    %v442 = vcvt.s32.f32 %v440
    %v443 = vcvt.s32.f32 %v441
    %444 = vmin.xlane.f32.xlu0 %v443
    %v445 = vpop.xlane.xlu0 %444
    %vm446 = vcmp.eq.f32.partialorder %v443, %v445
    %v447 = vsel %vm446, %v442, inf
    %448 = vmin.xlane.f32.xlu0 %v447
    %v449 = vpop.xlane.xlu0 %448
    %v450 = vcvt.f32.s32 %v449
    %v451 = vcvt.f32.s32 %v445
    %v452 = vshll.u32 %v451, 16
    %v453 = vadd.s32 %v452, %v450
    %vm454 = vcmp.eq.s32.totalorder %v273, %v74
    %vm455 = vcmp.eq.s32.totalorder %v288, %v75
    %vm456 = vcmp.eq.s32.totalorder %v303, %v76
    %vm457 = vcmp.eq.s32.totalorder %v318, %v77
    %vm458 = vcmp.eq.s32.totalorder %v333, %v78
    %vm459 = vcmp.eq.s32.totalorder %v348, %v79
    %vm460 = vcmp.eq.s32.totalorder %v363, %v80
    %vm461 = vcmp.eq.s32.totalorder %v378, %v81
    %vm462 = vcmp.eq.s32.totalorder %v393, %v82
    %vm463 = vcmp.eq.s32.totalorder %v408, %v83
    %vm464 = vcmp.eq.s32.totalorder %v423, %v84
    %vm465 = vcmp.eq.s32.totalorder %v438, %v85
    %vm466 = vcmp.eq.s32.totalorder %v453, %v86
    %v467 = vsel %vm454, 1, 0
    %v468 = vsel %vm455, 1, 0
    %v469 = vsel %vm456, 1, 0
    %v470 = vsel %vm457, 1, 0
    %v471 = vsel %vm458, 1, 0
    %v472 = vsel %vm459, 1, 0
    %v473 = vsel %vm460, 1, 0
    %v474 = vsel %vm461, 1, 0
    %v475 = vsel %vm462, 1, 0
    %v476 = vsel %vm463, 1, 0
    %v477 = vsel %vm464, 1, 0
    %v478 = vsel %vm465, 1, 0
    %v479 = vsel %vm466, 1, 0
    %v480 = vcvt.s32.f32 %v467
    %v481 = vcvt.s32.f32 %v468
    %v482 = vcvt.s32.f32 %v469
    %v483 = vcvt.s32.f32 %v470
    %v484 = vcvt.s32.f32 %v471
    %v485 = vcvt.s32.f32 %v472
    %v486 = vcvt.s32.f32 %v473
    %v487 = vcvt.s32.f32 %v474
    %v488 = vcvt.s32.f32 %v475
    %v489 = vcvt.s32.f32 %v476
    %v490 = vcvt.s32.f32 %v477
    %v491 = vcvt.s32.f32 %v478
    %v492 = vcvt.s32.f32 %v479
    %s493 = sadd.s32 0, 0
    %s494 = smul.u32 %s493, 104
    %v495 = vlaneseq
    %v496 = vshrl.u32 %v495, 7
    %v497 = vadd.s32 %v496, 8
    %v498 = vadd.s32 %v496, 16
    %v499 = vadd.s32 %v496, 24
    %v500 = vadd.s32 %v496, 32
    %v501 = vadd.s32 %v496, 40
    %v502 = vadd.s32 %v496, 48
    %v503 = vadd.s32 %v496, 56
    %v504 = vadd.s32 %v496, 64
    %v505 = vadd.s32 %v496, 72
    %v506 = vadd.s32 %v496, 80
    %v507 = vadd.s32 %v496, 88
    %v508 = vadd.s32 %v496, 96
    %v509 = vstv %s494
    %v510 = vadd.s32 %v509, %v496
    %v511 = vadd.s32 %v509, %v497
    %v512 = vadd.s32 %v509, %v498
    %v513 = vadd.s32 %v509, %v499
    %v514 = vadd.s32 %v509, %v500
    %v515 = vadd.s32 %v509, %v501
    %v516 = vadd.s32 %v509, %v502
    %v517 = vadd.s32 %v509, %v503
    %v518 = vadd.s32 %v509, %v504
    %v519 = vadd.s32 %v509, %v505
    %v520 = vadd.s32 %v509, %v506
    %v521 = vadd.s32 %v509, %v507
    %v522 = vadd.s32 %v509, %v508
    %vm523 = vcmp.lt.s32.totalorder %v510, 100
    %vm524 = vcmp.lt.s32.totalorder %v511, 100
    %vm525 = vcmp.lt.s32.totalorder %v512, 100
    %vm526 = vcmp.lt.s32.totalorder %v513, 100
    %vm527 = vcmp.lt.s32.totalorder %v514, 100
    %vm528 = vcmp.lt.s32.totalorder %v515, 100
    %vm529 = vcmp.lt.s32.totalorder %v516, 100
    %vm530 = vcmp.lt.s32.totalorder %v517, 100
    %vm531 = vcmp.lt.s32.totalorder %v518, 100
    %vm532 = vcmp.lt.s32.totalorder %v519, 100
    %vm533 = vcmp.lt.s32.totalorder %v520, 100
    %vm534 = vcmp.lt.s32.totalorder %v521, 100
    %vm535 = vcmp.lt.s32.totalorder %v522, 100
    %v536 = vsel %vm523, 1, 0
    %v537 = vsel %vm524, 1, 0
    %v538 = vsel %vm525, 1, 0
    %v539 = vsel %vm526, 1, 0
    %v540 = vsel %vm527, 1, 0
    %v541 = vsel %vm528, 1, 0
    %v542 = vsel %vm529, 1, 0
    %v543 = vsel %vm530, 1, 0
    %v544 = vsel %vm531, 1, 0
    %v545 = vsel %vm532, 1, 0
    %v546 = vsel %vm533, 1, 0
    %v547 = vsel %vm534, 1, 0
    %v548 = vsel %vm535, 1, 0
    %v549 = vcvt.s32.f32 %v536
    %v550 = vcvt.s32.f32 %v537
    %v551 = vcvt.s32.f32 %v538
    %v552 = vcvt.s32.f32 %v539
    %v553 = vcvt.s32.f32 %v540
    %v554 = vcvt.s32.f32 %v541
    %v555 = vcvt.s32.f32 %v542
    %v556 = vcvt.s32.f32 %v543
    %v557 = vcvt.s32.f32 %v544
    %v558 = vcvt.s32.f32 %v545
    %v559 = vcvt.s32.f32 %v546
    %v560 = vcvt.s32.f32 %v547
    %v561 = vcvt.s32.f32 %v548
    %v562 = vsel %vm523, %v206, 0.0
    %v563 = vsel %vm524, %v208, 0.0
    %v564 = vsel %vm525, %v210, 0.0
    %v565 = vsel %vm526, %v212, 0.0
    %v566 = vsel %vm527, %v214, 0.0
    %v567 = vsel %vm528, %v216, 0.0
    %v568 = vsel %vm529, %v218, 0.0
    %v569 = vsel %vm530, %v220, 0.0
    %v570 = vsel %vm531, %v222, 0.0
    %v571 = vsel %vm532, %v224, 0.0
    %v572 = vsel %vm533, %v226, 0.0
    %v573 = vsel %vm534, %v228, 0.0
    %v574 = vsel %vm535, %v230, 0.0
    %v575 = vsel %vm523, %v480, 0.0
    %v576 = vsel %vm524, %v481, 0.0
    %v577 = vsel %vm525, %v482, 0.0
    %v578 = vsel %vm526, %v483, 0.0
    %v579 = vsel %vm527, %v484, 0.0
    %v580 = vsel %vm528, %v485, 0.0
    %v581 = vsel %vm529, %v486, 0.0
    %v582 = vsel %vm530, %v487, 0.0
    %v583 = vsel %vm531, %v488, 0.0
    %v584 = vsel %vm532, %v489, 0.0
    %v585 = vsel %vm533, %v490, 0.0
    %v586 = vsel %vm534, %v491, 0.0
    %v587 = vsel %vm535, %v492, 0.0
    %v588 = vmul.f32 %v562, 15.0
    %v589 = vmul.f32 %v563, 15.0
    %v590 = vmul.f32 %v564, 15.0
    %v591 = vmul.f32 %v565, 15.0
    %v592 = vmul.f32 %v566, 15.0
    %v593 = vmul.f32 %v567, 15.0
    %v594 = vmul.f32 %v568, 15.0
    %v595 = vmul.f32 %v569, 15.0
    %v596 = vmul.f32 %v570, 15.0
    %v597 = vmul.f32 %v571, 15.0
    %v598 = vmul.f32 %v572, 15.0
    %v599 = vmul.f32 %v573, 15.0
    %v600 = vmul.f32 %v574, 15.0
    %v601 = vceil.f32 %v588
    %v602 = vceil.f32 %v589
    %v603 = vceil.f32 %v590
    %v604 = vceil.f32 %v591
    %v605 = vceil.f32 %v592
    %v606 = vceil.f32 %v593
    %v607 = vceil.f32 %v594
    %v608 = vceil.f32 %v595
    %v609 = vceil.f32 %v596
    %v610 = vceil.f32 %v597
    %v611 = vceil.f32 %v598
    %v612 = vceil.f32 %v599
    %v613 = vceil.f32 %v600
    %v614 = vcvt.f32.s32.to.zero.pseudo %v601
    %v615 = vcvt.f32.s32.to.zero.pseudo %v602
    %v616 = vcvt.f32.s32.to.zero.pseudo %v603
    %v617 = vcvt.f32.s32.to.zero.pseudo %v604
    %v618 = vcvt.f32.s32.to.zero.pseudo %v605
    %v619 = vcvt.f32.s32.to.zero.pseudo %v606
    %v620 = vcvt.f32.s32.to.zero.pseudo %v607
    %v621 = vcvt.f32.s32.to.zero.pseudo %v608
    %v622 = vcvt.f32.s32.to.zero.pseudo %v609
    %v623 = vcvt.f32.s32.to.zero.pseudo %v610
    %v624 = vcvt.f32.s32.to.zero.pseudo %v611
    %v625 = vcvt.f32.s32.to.zero.pseudo %v612
    %v626 = vcvt.f32.s32.to.zero.pseudo %v613
    %v627 = vsub.s32 %v614, 1
    %v628 = vsub.s32 %v615, 1
    %v629 = vsub.s32 %v616, 1
    %v630 = vsub.s32 %v617, 1
    %v631 = vsub.s32 %v618, 1
    %v632 = vsub.s32 %v619, 1
    %v633 = vsub.s32 %v620, 1
    %v634 = vsub.s32 %v621, 1
    %v635 = vsub.s32 %v622, 1
    %v636 = vsub.s32 %v623, 1
    %v637 = vsub.s32 %v624, 1
    %v638 = vsub.s32 %v625, 1
    %v639 = vsub.s32 %v626, 1
    %vm640 = vcmp.gt.s32.totalorder %v627, 0
    %v641 = vsel %vm640, %v627, 0
    %vm642 = vcmp.gt.s32.totalorder %v628, 0
    %v643 = vsel %vm642, %v628, 0
    %vm644 = vcmp.gt.s32.totalorder %v629, 0
    %v645 = vsel %vm644, %v629, 0
    %vm646 = vcmp.gt.s32.totalorder %v630, 0
    %v647 = vsel %vm646, %v630, 0
    %vm648 = vcmp.gt.s32.totalorder %v631, 0
    %v649 = vsel %vm648, %v631, 0
    %vm650 = vcmp.gt.s32.totalorder %v632, 0
    %v651 = vsel %vm650, %v632, 0
    %vm652 = vcmp.gt.s32.totalorder %v633, 0
    %v653 = vsel %vm652, %v633, 0
    %vm654 = vcmp.gt.s32.totalorder %v634, 0
    %v655 = vsel %vm654, %v634, 0
    %vm656 = vcmp.gt.s32.totalorder %v635, 0
    %v657 = vsel %vm656, %v635, 0
    %vm658 = vcmp.gt.s32.totalorder %v636, 0
    %v659 = vsel %vm658, %v636, 0
    %vm660 = vcmp.gt.s32.totalorder %v637, 0
    %v661 = vsel %vm660, %v637, 0
    %vm662 = vcmp.gt.s32.totalorder %v638, 0
    %v663 = vsel %vm662, %v638, 0
    %vm664 = vcmp.gt.s32.totalorder %v639, 0
    %v665 = vsel %vm664, %v639, 0
    %vm666 = vcmp.lt.s32.totalorder %v641, 14
    %v667 = vsel %vm666, %v641, 14
    %vm668 = vcmp.lt.s32.totalorder %v643, 14
    %v669 = vsel %vm668, %v643, 14
    %vm670 = vcmp.lt.s32.totalorder %v645, 14
    %v671 = vsel %vm670, %v645, 14
    %vm672 = vcmp.lt.s32.totalorder %v647, 14
    %v673 = vsel %vm672, %v647, 14
    %vm674 = vcmp.lt.s32.totalorder %v649, 14
    %v675 = vsel %vm674, %v649, 14
    %vm676 = vcmp.lt.s32.totalorder %v651, 14
    %v677 = vsel %vm676, %v651, 14
    %vm678 = vcmp.lt.s32.totalorder %v653, 14
    %v679 = vsel %vm678, %v653, 14
    %vm680 = vcmp.lt.s32.totalorder %v655, 14
    %v681 = vsel %vm680, %v655, 14
    %vm682 = vcmp.lt.s32.totalorder %v657, 14
    %v683 = vsel %vm682, %v657, 14
    %vm684 = vcmp.lt.s32.totalorder %v659, 14
    %v685 = vsel %vm684, %v659, 14
    %vm686 = vcmp.lt.s32.totalorder %v661, 14
    %v687 = vsel %vm686, %v661, 14
    %vm688 = vcmp.lt.s32.totalorder %v663, 14
    %v689 = vsel %vm688, %v663, 14
    %vm690 = vcmp.lt.s32.totalorder %v665, 14
    %v691 = vsel %vm690, %v665, 14
    %vm692 = vcmp.eq.s32.totalorder %v232, %v667
    %vm693 = vcmp.eq.s32.totalorder %v232, %v669
    %vm694 = vcmp.eq.s32.totalorder %v232, %v671
    %vm695 = vcmp.eq.s32.totalorder %v232, %v673
    %vm696 = vcmp.eq.s32.totalorder %v232, %v675
    %vm697 = vcmp.eq.s32.totalorder %v232, %v677
    %vm698 = vcmp.eq.s32.totalorder %v232, %v679
    %vm699 = vcmp.eq.s32.totalorder %v232, %v681
    %vm700 = vcmp.eq.s32.totalorder %v232, %v683
    %vm701 = vcmp.eq.s32.totalorder %v232, %v685
    %vm702 = vcmp.eq.s32.totalorder %v232, %v687
    %vm703 = vcmp.eq.s32.totalorder %v232, %v689
    %vm704 = vcmp.eq.s32.totalorder %v232, %v691
    %v705 = vsel %vm692, 1, 0
    %v706 = vsel %vm693, 1, 0
    %v707 = vsel %vm694, 1, 0
    %v708 = vsel %vm695, 1, 0
    %v709 = vsel %vm696, 1, 0
    %v710 = vsel %vm697, 1, 0
    %v711 = vsel %vm698, 1, 0
    %v712 = vsel %vm699, 1, 0
    %v713 = vsel %vm700, 1, 0
    %v714 = vsel %vm701, 1, 0
    %v715 = vsel %vm702, 1, 0
    %v716 = vsel %vm703, 1, 0
    %v717 = vsel %vm704, 1, 0
    %v718 = vcvt.s32.f32 %v705
    %v719 = vcvt.s32.f32 %v706
    %v720 = vcvt.s32.f32 %v707
    %v721 = vcvt.s32.f32 %v708
    %v722 = vcvt.s32.f32 %v709
    %v723 = vcvt.s32.f32 %v710
    %v724 = vcvt.s32.f32 %v711
    %v725 = vcvt.s32.f32 %v712
    %v726 = vcvt.s32.f32 %v713
    %v727 = vcvt.s32.f32 %v714
    %v728 = vcvt.s32.f32 %v715
    %v729 = vcvt.s32.f32 %v716
    %v730 = vcvt.s32.f32 %v717
    %vm731 = vcmp.eq.s32.totalorder %v232, 0
    %vm732 = vcmp.eq.s32.totalorder %v232, 1
    %vm733 = vcmp.eq.s32.totalorder %v232, 2
    %735 = vset.pattern.permute.xlu0 0
    %736 = vperm.xlu0 %735, %v575
    %v737 = vpop.permute.xlu0 %736
    %740 = vset.pattern.permute.xlu0 0
    %741 = vperm.xlu0 %740, %v576
    %v742 = vpop.permute.xlu0 %741
    %745 = vset.pattern.permute.xlu0 0
    %746 = vperm.xlu0 %745, %v577
    %v747 = vpop.permute.xlu0 %746
    %750 = vset.pattern.permute.xlu0 0
    %751 = vperm.xlu0 %750, %v578
    %v752 = vpop.permute.xlu0 %751
    %755 = vset.pattern.permute.xlu0 0
    %756 = vperm.xlu0 %755, %v579
    %v757 = vpop.permute.xlu0 %756
    %760 = vset.pattern.permute.xlu0 0
    %761 = vperm.xlu0 %760, %v580
    %v762 = vpop.permute.xlu0 %761
    %765 = vset.pattern.permute.xlu0 0
    %766 = vperm.xlu0 %765, %v581
    %v767 = vpop.permute.xlu0 %766
    %770 = vset.pattern.permute.xlu0 0
    %771 = vperm.xlu0 %770, %v582
    %v772 = vpop.permute.xlu0 %771
    %775 = vset.pattern.permute.xlu0 0
    %776 = vperm.xlu0 %775, %v583
    %v777 = vpop.permute.xlu0 %776
    %780 = vset.pattern.permute.xlu0 0
    %781 = vperm.xlu0 %780, %v584
    %v782 = vpop.permute.xlu0 %781
    %785 = vset.pattern.permute.xlu0 0
    %786 = vperm.xlu0 %785, %v585
    %v787 = vpop.permute.xlu0 %786
    %790 = vset.pattern.permute.xlu0 0
    %791 = vperm.xlu0 %790, %v586
    %v792 = vpop.permute.xlu0 %791
    %795 = vset.pattern.permute.xlu0 0
    %796 = vperm.xlu0 %795, %v587
    %v797 = vpop.permute.xlu0 %796
    %v799 = vsel %vm733, %v737, 0.0
    %v800 = vsel %vm733, %v742, 0.0
    %v801 = vsel %vm733, %v747, 0.0
    %v802 = vsel %vm733, %v752, 0.0
    %v803 = vsel %vm733, %v757, 0.0
    %v804 = vsel %vm733, %v762, 0.0
    %v805 = vsel %vm733, %v767, 0.0
    %v806 = vsel %vm733, %v772, 0.0
    %v807 = vsel %vm733, %v777, 0.0
    %v808 = vsel %vm733, %v782, 0.0
    %v809 = vsel %vm733, %v787, 0.0
    %v810 = vsel %vm733, %v792, 0.0
    %v811 = vsel %vm733, %v797, 0.0
    %v812 = vsel %vm732, %v562, %v799
    %v813 = vsel %vm732, %v563, %v800
    %v814 = vsel %vm732, %v564, %v801
    %v815 = vsel %vm732, %v565, %v802
    %v816 = vsel %vm732, %v566, %v803
    %v817 = vsel %vm732, %v567, %v804
    %v818 = vsel %vm732, %v568, %v805
    %v819 = vsel %vm732, %v569, %v806
    %v820 = vsel %vm732, %v570, %v807
    %v821 = vsel %vm732, %v571, %v808
    %v822 = vsel %vm732, %v572, %v809
    %v823 = vsel %vm732, %v573, %v810
    %v824 = vsel %vm732, %v574, %v811
    %v825 = vsel %vm731, %v549, %v812
    %v826 = vsel %vm731, %v550, %v813
    %v827 = vsel %vm731, %v551, %v814
    %v828 = vsel %vm731, %v552, %v815
    %v829 = vsel %vm731, %v553, %v816
    %v830 = vsel %vm731, %v554, %v817
    %v831 = vsel %vm731, %v555, %v818
    %v832 = vsel %vm731, %v556, %v819
    %v833 = vsel %vm731, %v557, %v820
    %v834 = vsel %vm731, %v558, %v821
    %v835 = vsel %vm731, %v559, %v822
    %v836 = vsel %vm731, %v560, %v823
    %v837 = vsel %vm731, %v561, %v824
    %838 = vxpose.xlu0.b32.start [1/16] %v825, 128
    %839 = vxpose.xlu0.b32.cont [2/16] %v826, 128
    %840 = vxpose.xlu0.b32.cont [3/16] %v827, 128
    %841 = vxpose.xlu0.b32.cont [4/16] %v828, 128
    %842 = vxpose.xlu0.b32.cont [5/16] %v829, 128
    %843 = vxpose.xlu0.b32.cont [6/16] %v830, 128
    %844 = vxpose.xlu0.b32.cont [7/16] %v831, 128
    %845 = vxpose.xlu0.b32.cont [8/16] %v832, 128
    %846 = vxpose.xlu0.b32.cont [9/16] %v833, 128
    %847 = vxpose.xlu0.b32.cont [10/16] %v834, 128
    %848 = vxpose.xlu0.b32.cont [11/16] %v835, 128
    %849 = vxpose.xlu0.b32.cont [12/16] %v836, 128
    %850 = vxpose.xlu0.b32.cont [13/16] %v837, 128
    %851 = vxpose.xlu0.b32.cont [14/16] 0.0, 128
    %852 = vxpose.xlu0.b32.cont [15/16] 0.0, 128
    %853 = vxpose.xlu0.b32.end [16/16] 0.0, 128
    %v854 = vpop.trf.xlu0
    %v855 = vpop.trf.xlu0
    %v856 = vpop.trf.xlu0
    %v857 = vpop.trf.xlu0
    %v858 = vpop.trf.xlu0
    %v859 = vpop.trf.xlu0
    %v860 = vpop.trf.xlu0
    %v861 = vpop.trf.xlu0
    %v862 = vpop.trf.xlu0
    %v863 = vpop.trf.xlu0
    %v864 = vpop.trf.xlu0
    %v865 = vpop.trf.xlu0
    %v866 = vpop.trf.xlu0
    %v867 = vpop.trf.xlu0
    %v868 = vpop.trf.xlu0
    %v869 = vpop.trf.xlu0
    %vm870 = vcmask 850944
    %v872 = vsel %vm870, %v854, 0
    %874 = vmatprep.subr.mxu0 0.0
    %875 = vmatpush1.msra.mxu0 0.0
    %876 = vmatprep.subr.mxu0 0.0
    %877 = vmatpush1.msra.mxu0 0.0
    %878 = vmatprep.subr.mxu0 0.0
    %879 = vmatpush1.msra.mxu0 0.0
    %880 = vmatprep.subr.mxu0 0.0
    %v881 = vand.u32 %v730, 4294901760
    %882 = vmatpush1.msra.mxu0 %v881
    %883 = vmatprep.subr.mxu0 0.0
    %v884 = vand.u32 %v729, 4294901760
    %885 = vmatpush1.msra.mxu0 %v884
    %886 = vmatprep.subr.mxu0 0.0
    %v887 = vand.u32 %v728, 4294901760
    %888 = vmatpush1.msra.mxu0 %v887
    %889 = vmatprep.subr.mxu0 0.0
    %v890 = vand.u32 %v727, 4294901760
    %891 = vmatpush1.msra.mxu0 %v890
    %892 = vmatprep.subr.mxu0 0.0
    %v893 = vand.u32 %v726, 4294901760
    %894 = vmatpush1.msra.mxu0 %v893
    %895 = vmatprep.subr.mxu0 0.0
    %v896 = vand.u32 %v725, 4294901760
    %897 = vmatpush1.msra.mxu0 %v896
    %898 = vmatprep.subr.mxu0 0.0
    %v899 = vand.u32 %v724, 4294901760
    %900 = vmatpush1.msra.mxu0 %v899
    %901 = vmatprep.subr.mxu0 0.0
    %v902 = vand.u32 %v723, 4294901760
    %903 = vmatpush1.msra.mxu0 %v902
    %904 = vmatprep.subr.mxu0 0.0
    %v905 = vand.u32 %v722, 4294901760
    %906 = vmatpush1.msra.mxu0 %v905
    %907 = vmatprep.subr.mxu0 0.0
    %v908 = vand.u32 %v721, 4294901760
    %909 = vmatpush1.msra.mxu0 %v908
    %910 = vmatprep.subr.mxu0 0.0
    %v911 = vand.u32 %v720, 4294901760
    %912 = vmatpush1.msra.mxu0 %v911
    %913 = vmatprep.subr.mxu0 0.0
    %v914 = vand.u32 %v719, 4294901760
    %915 = vmatpush1.msra.mxu0 %v914
    %916 = vmatprep.subr.mxu0 0.0
    %v917 = vand.u32 %v718, 4294901760
    %918 = vmatpush1.msra.mxu0 %v917
    %919 = vmatprep.subr.mxu0 0.0
    %920 = vmatpush2.msra.mxu0 0.0
    %921 = vmatprep.subr.mxu0 0.0
    %922 = vmatpush2.msra.mxu0 0.0
    %923 = vmatprep.subr.mxu0 0.0
    %924 = vmatpush2.msra.mxu0 0.0
    %925 = vmatprep.subr.mxu0 0.0
    %926 = vmatpush2.msra.mxu0 0.0
    %927 = vmatprep.subr.mxu0 0.0
    %928 = vmatpush2.msra.mxu0 0.0
    %929 = vmatprep.subr.mxu0 0.0
    %930 = vmatpush2.msra.mxu0 0.0
    %931 = vmatprep.subr.mxu0 0.0
    %932 = vmatpush2.msra.mxu0 0.0
    %933 = vmatprep.subr.mxu0 0.0
    %934 = vmatpush2.msra.mxu0 0.0
    %935 = vmatprep.subr.mxu0 0.0
    %936 = vmatpush2.msra.mxu0 0.0
    %937 = vmatprep.subr.mxu0 0.0
    %938 = vmatpush2.msra.mxu0 0.0
    %939 = vmatprep.subr.mxu0 0.0
    %940 = vmatpush2.msra.mxu0 0.0
    %941 = vmatprep.subr.mxu0 0.0
    %942 = vmatpush2.msra.mxu0 0.0
    %943 = vmatprep.subr.mxu0 0.0
    %944 = vmatpush2.msra.mxu0 0.0
    %945 = vmatprep.subr.mxu0 0.0
    %946 = vmatpush2.msra.mxu0 0.0
    %947 = vmatprep.subr.mxu0 0.0
    %948 = vmatpush2.msra.mxu0 0.0
    %949 = vmatprep.subr.mxu0 0.0
    %950 = vmatpush2.msra.mxu0 0.0
    %951 = vmatprep.mubr.f32.mxu0 0.0
    %v952 = vand.u32 %v872, 4294901760
    %v953 = vsub.f32 %v872, %v952
    %v954 = vand.u32 %v953, 4294901760
    %v955 = vsub.f32 %v953, %v954
    %v956 = vand.u32 %v955, 4294901760
    %957 = vmatmul.mubr.f32.gmra.mxu0 %v956
    %v958 = vpop.f32.mrf.mxu0
    %v959 = vadd.f32 0.0, %v958
    %v960 = vpop.f32.mrf.mxu0
    %961 = vdwg.mxu0
    %962 = vmatprep.subr.mxu0 0.0
    %963 = vmatpush1.msra.mxu0 0.0
    %964 = vmatprep.subr.mxu0 0.0
    %965 = vmatpush1.msra.mxu0 0.0
    %966 = vmatprep.subr.mxu0 0.0
    %967 = vmatpush1.msra.mxu0 0.0
    %968 = vmatprep.subr.mxu0 0.0
    %v969 = vand.u32 %v730, 4294901760
    %v970 = vsub.f32 %v730, %v969
    %v971 = vand.u32 %v970, 4294901760
    %v972 = vsub.f32 %v970, %v971
    %v973 = vand.u32 %v972, 4294901760
    %974 = vmatpush1.msra.mxu0 %v973
    %975 = vmatprep.subr.mxu0 0.0
    %v976 = vand.u32 %v729, 4294901760
    %v977 = vsub.f32 %v729, %v976
    %v978 = vand.u32 %v977, 4294901760
    %v979 = vsub.f32 %v977, %v978
    %v980 = vand.u32 %v979, 4294901760
    %981 = vmatpush1.msra.mxu0 %v980
    %982 = vmatprep.subr.mxu0 0.0
    %v983 = vand.u32 %v728, 4294901760
    %v984 = vsub.f32 %v728, %v983
    %v985 = vand.u32 %v984, 4294901760
    %v986 = vsub.f32 %v984, %v985
    %v987 = vand.u32 %v986, 4294901760
    %988 = vmatpush1.msra.mxu0 %v987
    %989 = vmatprep.subr.mxu0 0.0
    %v990 = vand.u32 %v727, 4294901760
    %v991 = vsub.f32 %v727, %v990
    %v992 = vand.u32 %v991, 4294901760
    %v993 = vsub.f32 %v991, %v992
    %v994 = vand.u32 %v993, 4294901760
    %995 = vmatpush1.msra.mxu0 %v994
    %996 = vmatprep.subr.mxu0 0.0
    %v997 = vand.u32 %v726, 4294901760
    %v998 = vsub.f32 %v726, %v997
    %v999 = vand.u32 %v998, 4294901760
    %v1000 = vsub.f32 %v998, %v999
    %v1001 = vand.u32 %v1000, 4294901760
    %1002 = vmatpush1.msra.mxu0 %v1001
    %1003 = vmatprep.subr.mxu0 0.0
    %v1004 = vand.u32 %v725, 4294901760
    %v1005 = vsub.f32 %v725, %v1004
    %v1006 = vand.u32 %v1005, 4294901760
    %v1007 = vsub.f32 %v1005, %v1006
    %v1008 = vand.u32 %v1007, 4294901760
    %1009 = vmatpush1.msra.mxu0 %v1008
    %1010 = vmatprep.subr.mxu0 0.0
    %v1011 = vand.u32 %v724, 4294901760
    %v1012 = vsub.f32 %v724, %v1011
    %v1013 = vand.u32 %v1012, 4294901760
    %v1014 = vsub.f32 %v1012, %v1013
    %v1015 = vand.u32 %v1014, 4294901760
    %1016 = vmatpush1.msra.mxu0 %v1015
    %1017 = vmatprep.subr.mxu0 0.0
    %v1018 = vand.u32 %v723, 4294901760
    %v1019 = vsub.f32 %v723, %v1018
    %v1020 = vand.u32 %v1019, 4294901760
    %v1021 = vsub.f32 %v1019, %v1020
    %v1022 = vand.u32 %v1021, 4294901760
    %1023 = vmatpush1.msra.mxu0 %v1022
    %1024 = vmatprep.subr.mxu0 0.0
    %v1025 = vand.u32 %v722, 4294901760
    %v1026 = vsub.f32 %v722, %v1025
    %v1027 = vand.u32 %v1026, 4294901760
    %v1028 = vsub.f32 %v1026, %v1027
    %v1029 = vand.u32 %v1028, 4294901760
    %1030 = vmatpush1.msra.mxu0 %v1029
    %1031 = vmatprep.subr.mxu0 0.0
    %v1032 = vand.u32 %v721, 4294901760
    %v1033 = vsub.f32 %v721, %v1032
    %v1034 = vand.u32 %v1033, 4294901760
    %v1035 = vsub.f32 %v1033, %v1034
    %v1036 = vand.u32 %v1035, 4294901760
    %1037 = vmatpush1.msra.mxu0 %v1036
    %1038 = vmatprep.subr.mxu0 0.0
    %v1039 = vand.u32 %v720, 4294901760
    %v1040 = vsub.f32 %v720, %v1039
    %v1041 = vand.u32 %v1040, 4294901760
    %v1042 = vsub.f32 %v1040, %v1041
    %v1043 = vand.u32 %v1042, 4294901760
    %1044 = vmatpush1.msra.mxu0 %v1043
    %1045 = vmatprep.subr.mxu0 0.0
    %v1046 = vand.u32 %v719, 4294901760
    %v1047 = vsub.f32 %v719, %v1046
    %v1048 = vand.u32 %v1047, 4294901760
    %v1049 = vsub.f32 %v1047, %v1048
    %v1050 = vand.u32 %v1049, 4294901760
    %1051 = vmatpush1.msra.mxu0 %v1050
    %1052 = vmatprep.subr.mxu0 0.0
    %v1053 = vand.u32 %v718, 4294901760
    %v1054 = vsub.f32 %v718, %v1053
    %v1055 = vand.u32 %v1054, 4294901760
    %v1056 = vsub.f32 %v1054, %v1055
    %v1057 = vand.u32 %v1056, 4294901760
    %1058 = vmatpush1.msra.mxu0 %v1057
    %1059 = vmatprep.subr.mxu0 0.0
    %1060 = vmatpush2.msra.mxu0 0.0
    %1061 = vmatprep.subr.mxu0 0.0
    %1062 = vmatpush2.msra.mxu0 0.0
    %1063 = vmatprep.subr.mxu0 0.0
    %1064 = vmatpush2.msra.mxu0 0.0
    %1065 = vmatprep.subr.mxu0 0.0
    %1066 = vmatpush2.msra.mxu0 0.0
    %1067 = vmatprep.subr.mxu0 0.0
    %1068 = vmatpush2.msra.mxu0 0.0
    %1069 = vmatprep.subr.mxu0 0.0
    %1070 = vmatpush2.msra.mxu0 0.0
    %1071 = vmatprep.subr.mxu0 0.0
    %1072 = vmatpush2.msra.mxu0 0.0
    %1073 = vmatprep.subr.mxu0 0.0
    %1074 = vmatpush2.msra.mxu0 0.0
    %1075 = vmatprep.subr.mxu0 0.0
    %1076 = vmatpush2.msra.mxu0 0.0
    %1077 = vmatprep.subr.mxu0 0.0
    %1078 = vmatpush2.msra.mxu0 0.0
    %1079 = vmatprep.subr.mxu0 0.0
    %1080 = vmatpush2.msra.mxu0 0.0
    %1081 = vmatprep.subr.mxu0 0.0
    %1082 = vmatpush2.msra.mxu0 0.0
    %1083 = vmatprep.subr.mxu0 0.0
    %1084 = vmatpush2.msra.mxu0 0.0
    %1085 = vmatprep.subr.mxu0 0.0
    %1086 = vmatpush2.msra.mxu0 0.0
    %1087 = vmatprep.subr.mxu0 0.0
    %1088 = vmatpush2.msra.mxu0 0.0
    %1089 = vmatprep.subr.mxu0 0.0
    %1090 = vmatpush2.msra.mxu0 0.0
    %1091 = vmatprep.mubr.f32.mxu0 0.0
    %v1092 = vand.u32 %v872, 4294901760
    %1093 = vmatmul.mubr.f32.gmra.mxu0 %v1092
    %v1094 = vpop.f32.mrf.mxu0
    %v1095 = vadd.f32 %v959, %v1094
    %v1096 = vpop.f32.mrf.mxu0
    %1097 = vdwg.mxu0
    %1098 = vmatprep.subr.mxu0 0.0
    %1099 = vmatpush1.msra.mxu0 0.0
    %1100 = vmatprep.subr.mxu0 0.0
    %1101 = vmatpush1.msra.mxu0 0.0
    %1102 = vmatprep.subr.mxu0 0.0
    %1103 = vmatpush1.msra.mxu0 0.0
    %1104 = vmatprep.subr.mxu0 0.0
    %v1105 = vand.u32 %v730, 4294901760
    %v1106 = vsub.f32 %v730, %v1105
    %1107 = vmatpush1.msra.mxu0 %v1106
    %1108 = vmatprep.subr.mxu0 0.0
    %v1109 = vand.u32 %v729, 4294901760
    %v1110 = vsub.f32 %v729, %v1109
    %1111 = vmatpush1.msra.mxu0 %v1110
    %1112 = vmatprep.subr.mxu0 0.0
    %v1113 = vand.u32 %v728, 4294901760
    %v1114 = vsub.f32 %v728, %v1113
    %1115 = vmatpush1.msra.mxu0 %v1114
    %1116 = vmatprep.subr.mxu0 0.0
    %v1117 = vand.u32 %v727, 4294901760
    %v1118 = vsub.f32 %v727, %v1117
    %1119 = vmatpush1.msra.mxu0 %v1118
    %1120 = vmatprep.subr.mxu0 0.0
    %v1121 = vand.u32 %v726, 4294901760
    %v1122 = vsub.f32 %v726, %v1121
    %1123 = vmatpush1.msra.mxu0 %v1122
    %1124 = vmatprep.subr.mxu0 0.0
    %v1125 = vand.u32 %v725, 4294901760
    %v1126 = vsub.f32 %v725, %v1125
    %1127 = vmatpush1.msra.mxu0 %v1126
    %1128 = vmatprep.subr.mxu0 0.0
    %v1129 = vand.u32 %v724, 4294901760
    %v1130 = vsub.f32 %v724, %v1129
    %1131 = vmatpush1.msra.mxu0 %v1130
    %1132 = vmatprep.subr.mxu0 0.0
    %v1133 = vand.u32 %v723, 4294901760
    %v1134 = vsub.f32 %v723, %v1133
    %1135 = vmatpush1.msra.mxu0 %v1134
    %1136 = vmatprep.subr.mxu0 0.0
    %v1137 = vand.u32 %v722, 4294901760
    %v1138 = vsub.f32 %v722, %v1137
    %1139 = vmatpush1.msra.mxu0 %v1138
    %1140 = vmatprep.subr.mxu0 0.0
    %v1141 = vand.u32 %v721, 4294901760
    %v1142 = vsub.f32 %v721, %v1141
    %1143 = vmatpush1.msra.mxu0 %v1142
    %1144 = vmatprep.subr.mxu0 0.0
    %v1145 = vand.u32 %v720, 4294901760
    %v1146 = vsub.f32 %v720, %v1145
    %1147 = vmatpush1.msra.mxu0 %v1146
    %1148 = vmatprep.subr.mxu0 0.0
    %v1149 = vand.u32 %v719, 4294901760
    %v1150 = vsub.f32 %v719, %v1149
    %1151 = vmatpush1.msra.mxu0 %v1150
    %1152 = vmatprep.subr.mxu0 0.0
    %v1153 = vand.u32 %v718, 4294901760
    %v1154 = vsub.f32 %v718, %v1153
    %1155 = vmatpush1.msra.mxu0 %v1154
    %1156 = vmatprep.subr.mxu0 0.0
    %1157 = vmatpush2.msra.mxu0 0.0
    %1158 = vmatprep.subr.mxu0 0.0
    %1159 = vmatpush2.msra.mxu0 0.0
    %1160 = vmatprep.subr.mxu0 0.0
    %1161 = vmatpush2.msra.mxu0 0.0
    %1162 = vmatprep.subr.mxu0 0.0
    %1163 = vmatpush2.msra.mxu0 0.0
    %1164 = vmatprep.subr.mxu0 0.0
    %1165 = vmatpush2.msra.mxu0 0.0
    %1166 = vmatprep.subr.mxu0 0.0
    %1167 = vmatpush2.msra.mxu0 0.0
    %1168 = vmatprep.subr.mxu0 0.0
    %1169 = vmatpush2.msra.mxu0 0.0
    %1170 = vmatprep.subr.mxu0 0.0
    %1171 = vmatpush2.msra.mxu0 0.0
    %1172 = vmatprep.subr.mxu0 0.0
    %1173 = vmatpush2.msra.mxu0 0.0
    %1174 = vmatprep.subr.mxu0 0.0
    %1175 = vmatpush2.msra.mxu0 0.0
    %1176 = vmatprep.subr.mxu0 0.0
    %1177 = vmatpush2.msra.mxu0 0.0
    %1178 = vmatprep.subr.mxu0 0.0
    %1179 = vmatpush2.msra.mxu0 0.0
    %1180 = vmatprep.subr.mxu0 0.0
    %1181 = vmatpush2.msra.mxu0 0.0
    %1182 = vmatprep.subr.mxu0 0.0
    %1183 = vmatpush2.msra.mxu0 0.0
    %1184 = vmatprep.subr.mxu0 0.0
    %1185 = vmatpush2.msra.mxu0 0.0
    %1186 = vmatprep.subr.mxu0 0.0
    %1187 = vmatpush2.msra.mxu0 0.0
    %1188 = vmatprep.mubr.f32.mxu0 0.0
    %v1189 = vand.u32 %v872, 4294901760
    %v1190 = vsub.f32 %v872, %v1189
    %1191 = vmatmul.mubr.f32.gmra.mxu0 %v1190
    %v1192 = vpop.f32.mrf.mxu0
    %v1193 = vadd.f32 %v1095, %v1192
    %v1194 = vpop.f32.mrf.mxu0
    %1195 = vdwg.mxu0
    %1196 = vmatprep.subr.mxu0 0.0
    %1197 = vmatpush1.msra.mxu0 0.0
    %1198 = vmatprep.subr.mxu0 0.0
    %1199 = vmatpush1.msra.mxu0 0.0
    %1200 = vmatprep.subr.mxu0 0.0
    %1201 = vmatpush1.msra.mxu0 0.0
    %1202 = vmatprep.subr.mxu0 0.0
    %v1203 = vand.u32 %v730, 4294901760
    %1204 = vmatpush1.msra.mxu0 %v1203
    %1205 = vmatprep.subr.mxu0 0.0
    %v1206 = vand.u32 %v729, 4294901760
    %1207 = vmatpush1.msra.mxu0 %v1206
    %1208 = vmatprep.subr.mxu0 0.0
    %v1209 = vand.u32 %v728, 4294901760
    %1210 = vmatpush1.msra.mxu0 %v1209
    %1211 = vmatprep.subr.mxu0 0.0
    %v1212 = vand.u32 %v727, 4294901760
    %1213 = vmatpush1.msra.mxu0 %v1212
    %1214 = vmatprep.subr.mxu0 0.0
    %v1215 = vand.u32 %v726, 4294901760
    %1216 = vmatpush1.msra.mxu0 %v1215
    %1217 = vmatprep.subr.mxu0 0.0
    %v1218 = vand.u32 %v725, 4294901760
    %1219 = vmatpush1.msra.mxu0 %v1218
    %1220 = vmatprep.subr.mxu0 0.0
    %v1221 = vand.u32 %v724, 4294901760
    %1222 = vmatpush1.msra.mxu0 %v1221
    %1223 = vmatprep.subr.mxu0 0.0
    %v1224 = vand.u32 %v723, 4294901760
    %1225 = vmatpush1.msra.mxu0 %v1224
    %1226 = vmatprep.subr.mxu0 0.0
    %v1227 = vand.u32 %v722, 4294901760
    %1228 = vmatpush1.msra.mxu0 %v1227
    %1229 = vmatprep.subr.mxu0 0.0
    %v1230 = vand.u32 %v721, 4294901760
    %1231 = vmatpush1.msra.mxu0 %v1230
    %1232 = vmatprep.subr.mxu0 0.0
    %v1233 = vand.u32 %v720, 4294901760
    %1234 = vmatpush1.msra.mxu0 %v1233
    %1235 = vmatprep.subr.mxu0 0.0
    %v1236 = vand.u32 %v719, 4294901760
    %1237 = vmatpush1.msra.mxu0 %v1236
    %1238 = vmatprep.subr.mxu0 0.0
    %v1239 = vand.u32 %v718, 4294901760
    %1240 = vmatpush1.msra.mxu0 %v1239
    %1241 = vmatprep.subr.mxu0 0.0
    %1242 = vmatpush2.msra.mxu0 0.0
    %1243 = vmatprep.subr.mxu0 0.0
    %1244 = vmatpush2.msra.mxu0 0.0
    %1245 = vmatprep.subr.mxu0 0.0
    %1246 = vmatpush2.msra.mxu0 0.0
    %1247 = vmatprep.subr.mxu0 0.0
    %1248 = vmatpush2.msra.mxu0 0.0
    %1249 = vmatprep.subr.mxu0 0.0
    %1250 = vmatpush2.msra.mxu0 0.0
    %1251 = vmatprep.subr.mxu0 0.0
    %1252 = vmatpush2.msra.mxu0 0.0
    %1253 = vmatprep.subr.mxu0 0.0
    %1254 = vmatpush2.msra.mxu0 0.0
    %1255 = vmatprep.subr.mxu0 0.0
    %1256 = vmatpush2.msra.mxu0 0.0
    %1257 = vmatprep.subr.mxu0 0.0
    %1258 = vmatpush2.msra.mxu0 0.0
    %1259 = vmatprep.subr.mxu0 0.0
    %1260 = vmatpush2.msra.mxu0 0.0
    %1261 = vmatprep.subr.mxu0 0.0
    %1262 = vmatpush2.msra.mxu0 0.0
    %1263 = vmatprep.subr.mxu0 0.0
    %1264 = vmatpush2.msra.mxu0 0.0
    %1265 = vmatprep.subr.mxu0 0.0
    %1266 = vmatpush2.msra.mxu0 0.0
    %1267 = vmatprep.subr.mxu0 0.0
    %1268 = vmatpush2.msra.mxu0 0.0
    %1269 = vmatprep.subr.mxu0 0.0
    %1270 = vmatpush2.msra.mxu0 0.0
    %1271 = vmatprep.subr.mxu0 0.0
    %1272 = vmatpush2.msra.mxu0 0.0
    %1273 = vmatprep.mubr.f32.mxu0 0.0
    %v1274 = vand.u32 %v872, 4294901760
    %v1275 = vsub.f32 %v872, %v1274
    %v1276 = vand.u32 %v1275, 4294901760
    %1277 = vmatmul.mubr.f32.gmra.mxu0 %v1276
    %v1278 = vpop.f32.mrf.mxu0
    %v1279 = vadd.f32 %v1193, %v1278
    %v1280 = vpop.f32.mrf.mxu0
    %1281 = vdwg.mxu0
    %1282 = vmatprep.subr.mxu0 0.0
    %1283 = vmatpush1.msra.mxu0 0.0
    %1284 = vmatprep.subr.mxu0 0.0
    %1285 = vmatpush1.msra.mxu0 0.0
    %1286 = vmatprep.subr.mxu0 0.0
    %1287 = vmatpush1.msra.mxu0 0.0
    %1288 = vmatprep.subr.mxu0 0.0
    %v1289 = vand.u32 %v730, 4294901760
    %v1290 = vsub.f32 %v730, %v1289
    %v1291 = vand.u32 %v1290, 4294901760
    %1292 = vmatpush1.msra.mxu0 %v1291
    %1293 = vmatprep.subr.mxu0 0.0
    %v1294 = vand.u32 %v729, 4294901760
    %v1295 = vsub.f32 %v729, %v1294
    %v1296 = vand.u32 %v1295, 4294901760
    %1297 = vmatpush1.msra.mxu0 %v1296
    %1298 = vmatprep.subr.mxu0 0.0
    %v1299 = vand.u32 %v728, 4294901760
    %v1300 = vsub.f32 %v728, %v1299
    %v1301 = vand.u32 %v1300, 4294901760
    %1302 = vmatpush1.msra.mxu0 %v1301
    %1303 = vmatprep.subr.mxu0 0.0
    %v1304 = vand.u32 %v727, 4294901760
    %v1305 = vsub.f32 %v727, %v1304
    %v1306 = vand.u32 %v1305, 4294901760
    %1307 = vmatpush1.msra.mxu0 %v1306
    %1308 = vmatprep.subr.mxu0 0.0
    %v1309 = vand.u32 %v726, 4294901760
    %v1310 = vsub.f32 %v726, %v1309
    %v1311 = vand.u32 %v1310, 4294901760
    %1312 = vmatpush1.msra.mxu0 %v1311
    %1313 = vmatprep.subr.mxu0 0.0
    %v1314 = vand.u32 %v725, 4294901760
    %v1315 = vsub.f32 %v725, %v1314
    %v1316 = vand.u32 %v1315, 4294901760
    %1317 = vmatpush1.msra.mxu0 %v1316
    %1318 = vmatprep.subr.mxu0 0.0
    %v1319 = vand.u32 %v724, 4294901760
    %v1320 = vsub.f32 %v724, %v1319
    %v1321 = vand.u32 %v1320, 4294901760
    %1322 = vmatpush1.msra.mxu0 %v1321
    %1323 = vmatprep.subr.mxu0 0.0
    %v1324 = vand.u32 %v723, 4294901760
    %v1325 = vsub.f32 %v723, %v1324
    %v1326 = vand.u32 %v1325, 4294901760
    %1327 = vmatpush1.msra.mxu0 %v1326
    %1328 = vmatprep.subr.mxu0 0.0
    %v1329 = vand.u32 %v722, 4294901760
    %v1330 = vsub.f32 %v722, %v1329
    %v1331 = vand.u32 %v1330, 4294901760
    %1332 = vmatpush1.msra.mxu0 %v1331
    %1333 = vmatprep.subr.mxu0 0.0
    %v1334 = vand.u32 %v721, 4294901760
    %v1335 = vsub.f32 %v721, %v1334
    %v1336 = vand.u32 %v1335, 4294901760
    %1337 = vmatpush1.msra.mxu0 %v1336
    %1338 = vmatprep.subr.mxu0 0.0
    %v1339 = vand.u32 %v720, 4294901760
    %v1340 = vsub.f32 %v720, %v1339
    %v1341 = vand.u32 %v1340, 4294901760
    %1342 = vmatpush1.msra.mxu0 %v1341
    %1343 = vmatprep.subr.mxu0 0.0
    %v1344 = vand.u32 %v719, 4294901760
    %v1345 = vsub.f32 %v719, %v1344
    %v1346 = vand.u32 %v1345, 4294901760
    %1347 = vmatpush1.msra.mxu0 %v1346
    %1348 = vmatprep.subr.mxu0 0.0
    %v1349 = vand.u32 %v718, 4294901760
    %v1350 = vsub.f32 %v718, %v1349
    %v1351 = vand.u32 %v1350, 4294901760
    %1352 = vmatpush1.msra.mxu0 %v1351
    %1353 = vmatprep.subr.mxu0 0.0
    %1354 = vmatpush2.msra.mxu0 0.0
    %1355 = vmatprep.subr.mxu0 0.0
    %1356 = vmatpush2.msra.mxu0 0.0
    %1357 = vmatprep.subr.mxu0 0.0
    %1358 = vmatpush2.msra.mxu0 0.0
    %1359 = vmatprep.subr.mxu0 0.0
    %1360 = vmatpush2.msra.mxu0 0.0
    %1361 = vmatprep.subr.mxu0 0.0
    %1362 = vmatpush2.msra.mxu0 0.0
    %1363 = vmatprep.subr.mxu0 0.0
    %1364 = vmatpush2.msra.mxu0 0.0
    %1365 = vmatprep.subr.mxu0 0.0
    %1366 = vmatpush2.msra.mxu0 0.0
    %1367 = vmatprep.subr.mxu0 0.0
    %1368 = vmatpush2.msra.mxu0 0.0
    %1369 = vmatprep.subr.mxu0 0.0
    %1370 = vmatpush2.msra.mxu0 0.0
    %1371 = vmatprep.subr.mxu0 0.0
    %1372 = vmatpush2.msra.mxu0 0.0
    %1373 = vmatprep.subr.mxu0 0.0
    %1374 = vmatpush2.msra.mxu0 0.0
    %1375 = vmatprep.subr.mxu0 0.0
    %1376 = vmatpush2.msra.mxu0 0.0
    %1377 = vmatprep.subr.mxu0 0.0
    %1378 = vmatpush2.msra.mxu0 0.0
    %1379 = vmatprep.subr.mxu0 0.0
    %1380 = vmatpush2.msra.mxu0 0.0
    %1381 = vmatprep.subr.mxu0 0.0
    %1382 = vmatpush2.msra.mxu0 0.0
    %1383 = vmatprep.subr.mxu0 0.0
    %1384 = vmatpush2.msra.mxu0 0.0
    %1385 = vmatprep.mubr.f32.mxu0 0.0
    %v1386 = vand.u32 %v872, 4294901760
    %1387 = vmatmul.mubr.f32.gmra.mxu0 %v1386
    %v1388 = vpop.f32.mrf.mxu0
    %v1389 = vadd.f32 %v1279, %v1388
    %v1390 = vpop.f32.mrf.mxu0
    %1391 = vdwg.mxu0
    %1392 = vmatprep.subr.mxu0 0.0
    %1393 = vmatpush1.msra.mxu0 0.0
    %1394 = vmatprep.subr.mxu0 0.0
    %1395 = vmatpush1.msra.mxu0 0.0
    %1396 = vmatprep.subr.mxu0 0.0
    %1397 = vmatpush1.msra.mxu0 0.0
    %1398 = vmatprep.subr.mxu0 0.0
    %v1399 = vand.u32 %v730, 4294901760
    %1400 = vmatpush1.msra.mxu0 %v1399
    %1401 = vmatprep.subr.mxu0 0.0
    %v1402 = vand.u32 %v729, 4294901760
    %1403 = vmatpush1.msra.mxu0 %v1402
    %1404 = vmatprep.subr.mxu0 0.0
    %v1405 = vand.u32 %v728, 4294901760
    %1406 = vmatpush1.msra.mxu0 %v1405
    %1407 = vmatprep.subr.mxu0 0.0
    %v1408 = vand.u32 %v727, 4294901760
    %1409 = vmatpush1.msra.mxu0 %v1408
    %1410 = vmatprep.subr.mxu0 0.0
    %v1411 = vand.u32 %v726, 4294901760
    %1412 = vmatpush1.msra.mxu0 %v1411
    %1413 = vmatprep.subr.mxu0 0.0
    %v1414 = vand.u32 %v725, 4294901760
    %1415 = vmatpush1.msra.mxu0 %v1414
    %1416 = vmatprep.subr.mxu0 0.0
    %v1417 = vand.u32 %v724, 4294901760
    %1418 = vmatpush1.msra.mxu0 %v1417
    %1419 = vmatprep.subr.mxu0 0.0
    %v1420 = vand.u32 %v723, 4294901760
    %1421 = vmatpush1.msra.mxu0 %v1420
    %1422 = vmatprep.subr.mxu0 0.0
    %v1423 = vand.u32 %v722, 4294901760
    %1424 = vmatpush1.msra.mxu0 %v1423
    %1425 = vmatprep.subr.mxu0 0.0
    %v1426 = vand.u32 %v721, 4294901760
    %1427 = vmatpush1.msra.mxu0 %v1426
    %1428 = vmatprep.subr.mxu0 0.0
    %v1429 = vand.u32 %v720, 4294901760
    %1430 = vmatpush1.msra.mxu0 %v1429
    %1431 = vmatprep.subr.mxu0 0.0
    %v1432 = vand.u32 %v719, 4294901760
    %1433 = vmatpush1.msra.mxu0 %v1432
    %1434 = vmatprep.subr.mxu0 0.0
    %v1435 = vand.u32 %v718, 4294901760
    %1436 = vmatpush1.msra.mxu0 %v1435
    %1437 = vmatprep.subr.mxu0 0.0
    %1438 = vmatpush2.msra.mxu0 0.0
    %1439 = vmatprep.subr.mxu0 0.0
    %1440 = vmatpush2.msra.mxu0 0.0
    %1441 = vmatprep.subr.mxu0 0.0
    %1442 = vmatpush2.msra.mxu0 0.0
    %1443 = vmatprep.subr.mxu0 0.0
    %1444 = vmatpush2.msra.mxu0 0.0
    %1445 = vmatprep.subr.mxu0 0.0
    %1446 = vmatpush2.msra.mxu0 0.0
    %1447 = vmatprep.subr.mxu0 0.0
    %1448 = vmatpush2.msra.mxu0 0.0
    %1449 = vmatprep.subr.mxu0 0.0
    %1450 = vmatpush2.msra.mxu0 0.0
    %1451 = vmatprep.subr.mxu0 0.0
    %1452 = vmatpush2.msra.mxu0 0.0
    %1453 = vmatprep.subr.mxu0 0.0
    %1454 = vmatpush2.msra.mxu0 0.0
    %1455 = vmatprep.subr.mxu0 0.0
    %1456 = vmatpush2.msra.mxu0 0.0
    %1457 = vmatprep.subr.mxu0 0.0
    %1458 = vmatpush2.msra.mxu0 0.0
    %1459 = vmatprep.subr.mxu0 0.0
    %1460 = vmatpush2.msra.mxu0 0.0
    %1461 = vmatprep.subr.mxu0 0.0
    %1462 = vmatpush2.msra.mxu0 0.0
    %1463 = vmatprep.subr.mxu0 0.0
    %1464 = vmatpush2.msra.mxu0 0.0
    %1465 = vmatprep.subr.mxu0 0.0
    %1466 = vmatpush2.msra.mxu0 0.0
    %1467 = vmatprep.subr.mxu0 0.0
    %1468 = vmatpush2.msra.mxu0 0.0
    %1469 = vmatprep.mubr.f32.mxu0 0.0
    %v1470 = vand.u32 %v872, 4294901760
    %1471 = vmatmul.mubr.f32.gmra.mxu0 %v1470
    %v1472 = vpop.f32.mrf.mxu0
    %v1473 = vadd.f32 %v1389, %v1472
    %v1474 = vpop.f32.mrf.mxu0
    %1475 = vdwg.mxu0
    %v1476 = vld [vmem:[#allocation2] sm:$0xff]
    %v1477 = vadd.f32 %v1476, %v1473
    %1478 = vst [vmem:[#allocation2] sm:$0xff] %v1477
    // Predicated region
    $region14: #{tpu_custom_call.1} parent=1 // pred_check
      _
    $region15: #{tpu_custom_call.1} parent=1 // pred_check_branch
      %1480 = sbr.rel (0) target = $region17
    $region16: #{tpu_custom_call.1} parent=1 // pred_region
      %s1482 = ssub.s32 128, 128
      %1483 = vsyncadd [#allocation3], %s1482
      %s1485 = sshll.u32 [#allocation2], 4
      %s1486 = int_to_ptr.vmem [resolvable:$true] %s1485
      %1488 = dma.vmem_to_hbm [thread:$0]  %s1486, 128, %s2, [#allocation3]
    $region17: #{tpu_custom_call.1} parent=1 // pred_fallthru
      _
    // Predicated region
    $region18: #{tpu_custom_call.1} parent=1 // pred_check
      _
    $region19: #{tpu_custom_call.1} parent=1 // pred_check_branch
      %1490 = sbr.rel (0) target = $region21
    $region20: #{tpu_custom_call.1} parent=1 // pred_region
      %1491 = dma.done [#allocation3], 128
    $region21: #{tpu_custom_call.1} parent=1 // pred_fallthru
      _
    %1492 = vsyncpa [#allocation3], 1

</llo_original>
